<compile_context>
chip_gen: v7x
topology: tpu7x:2x2x1
jax: 0.10.0
libtpu: 0.0.40
codegen_flags: <defaults>
</compile_context>

<pallas_src>
import jax
import jax.numpy as jnp
from jax import lax
from jax.experimental import pallas as pl
from jax.experimental.pallas import tpu as pltpu


INPUT_SIZE = 22
L1, L2, L3 = 512, 128, 32
LEAKY_SLOPE = 0.01   # PyTorch F.leaky_relu default negative_slope
LANE = 128           # TPU vreg lane width

# VMEM budgeting (conservative for v7x's 64 MiB per-TC VMEM; generous margin
# on v5e/v6e's 128 MiB). The scoped limit is raised past the 16/32 MiB
# defaults so large tiles compile on every generation.
_ACT_VMEM_BUDGET = 24 << 20   # per-step activations + pipelined I/O buffers
_FIXED_BYTES = 2 << 20        # weights + lane-padded biases (double-buffered)
_VMEM_LIMIT_BYTES = 48 << 20  # scoped VMEM limit handed to Mosaic


def _round_up(n, m):
    return ((n + m - 1) // m) * m


def _round_down(n, m):
    return (n // m) * m


def _leaky_relu(x):
    # max-form: mul+max (2 VALU ops/vreg) instead of cmp+mul+select (3).
    # Equivalent to the where-form because 0 < LEAKY_SLOPE < 1.
    return jnp.maximum(x, LEAKY_SLOPE * x)


def _per_sample_vmem_bytes(compute_itemsize):
    """Rough per-batch-element VMEM cost of one grid step."""
    ds = compute_itemsize
    return (
        2 * LANE * ds                    # x block, lane-padded to 128, 2 bufs
        + (L1 + L2 + L3) * (4 + ds)      # f32 MXU accumulator + compute-dtype copy
        + 2 * 4                          # (1, T) f32 output block, 2 bufs
    )


def _select_tile(batch, batch_tile, compute_itemsize):
    """Lane-aligned batch tile: VMEM-budgeted, >=2 grid steps when possible."""
    bp0 = _round_up(batch, LANE)
    tile = min(int(batch_tile), bp0)
    vmem_cap = _round_down(
        (_ACT_VMEM_BUDGET - _FIXED_BYTES) // _per_sample_vmem_bytes(compute_itemsize),
        LANE)
    tile = min(tile, max(LANE, vmem_cap))
    if bp0 >= 2 * LANE:
        # Keep >= 2 grid steps so the "parallel" axis can feed both v7x TCs.
        tile = min(tile, max(LANE, _round_down(bp0 // 2, LANE)))
    return max(LANE, _round_down(tile, LANE))


def mlp_kernel(x_ref, w1_ref, b1_ref, w2_ref, b2_ref,
               w3_ref, b3_ref, w4_ref, b4_ref, o_ref):
    """Fused forward pass. x block is (T, 22); activations are (features, T)."""
    w_dtype = w1_ref.dtype  # bf16 on the fast path, f32 otherwise

    x = x_ref[...]                                                    # (T, 22)

    # Layer 1: contract the 22-feature axis of both operands -> (512, T).
    # (w1 . x^T without any wrapper-side transpose of x.)
    h = lax.dot_general(w1_ref[...], x,
                        dimension_numbers=(((1,), (1,)), ((), ())),
                        preferred_element_type=jnp.float32) + b1_ref[...]
    h = _leaky_relu(h)

    # Layer 2: (128, 512) @ (512, T) -> (128, T)
    h = jnp.dot(w2_ref[...], h.astype(w_dtype),
                preferred_element_type=jnp.float32) + b2_ref[...]
    h = jnp.maximum(h, 0.0)

    # Layer 3: (32, 128) @ (128, T) -> (32, T)
    h = jnp.dot(w3_ref[...], h.astype(w_dtype),
                preferred_element_type=jnp.float32) + b3_ref[...]
    h = _leaky_relu(h)

    # Layer 4 (32 -> 1): VPU multiply + XLU sublane reduce instead of an M=1
    # matmul (keeps the MXU for the three real matmuls, lane-dense result).
    logits = jnp.sum(h * w4_ref[...], axis=0, keepdims=True) + b4_ref[...]   # (1, T)

    # Lane-dense (1, tile) store; sigmoid's exp runs on the EUP slot.
    o_ref[...] = jax.nn.sigmoid(logits)


def net_forward(x, params, *, batch_tile=8192, compute_dtype=jnp.bfloat16):
    """x: (B, 22) float32 -> (B, 1) float32.

    Weights are in PyTorch nn.Linear layout: W_i is (out, in), b_i is (out, 1).
    Default compute path is bf16 weights/activations with f32 MXU
    accumulation; pass compute_dtype=jnp.float32 for the bit-accurate path.
    """
    w1, b1, w2, b2, w3, b3, w4, b4 = params
    B = x.shape[0]
    assert x.shape[1] == INPUT_SIZE

    ds = jnp.dtype(compute_dtype).itemsize
    tile = _select_tile(B, batch_tile, ds)
    Bp = _round_up(B, tile)
    if Bp != B:
        x = jnp.pad(x, ((0, Bp - B), (0, 0)))   # padded rows computed, sliced off

    w4c = w4.T                                  # (32, 1) column for the head
    if jnp.dtype(compute_dtype) != jnp.dtype(jnp.float32):
        x = x.astype(compute_dtype)
        w1, w2, w3, w4c = (w.astype(compute_dtype) for w in (w1, w2, w3, w4c))
        # biases stay f32: added to the f32 accumulator for free.

    grid = (Bp // tile,)

    def rep(a):  # full (untiled) block, replicated across every grid step
        return pl.BlockSpec(a.shape, lambda i, nd=a.ndim: (0,) * nd)

    out = pl.pallas_call(
        mlp_kernel,
        out_shape=jax.ShapeDtypeStruct((1, Bp), jnp.float32),
        grid_spec=pltpu.PrefetchScalarGridSpec(
            num_scalar_prefetch=0,
            grid=grid,
            in_specs=[
                pl.BlockSpec((tile, INPUT_SIZE), lambda i: (i, 0)),
                rep(w1), rep(b1),
                rep(w2), rep(b2),
                rep(w3), rep(b3),
                rep(w4c), rep(b4),
            ],
            out_specs=pl.BlockSpec((1, tile), lambda i: (0, i)),
        ),
        compiler_params=pltpu.CompilerParams(
            dimension_semantics=("parallel",),
            vmem_limit_bytes=_VMEM_LIMIT_BYTES),
    )(x, w1, b1, w2, b2, w3, b3, w4c, b4)

    return out[0, :B].reshape(B, 1)


def init_params(key):
    """PyTorch-style U(-1/sqrt(fan_in), 1/sqrt(fan_in)); W:(out,in), b:(out,1)."""
    dims = [(INPUT_SIZE, L1), (L1, L2), (L2, L3), (L3, 1)]
    params = []
    for fan_in, fan_out in dims:
        key, kw, kb = jax.random.split(key, 3)
        bound = 1.0 / jnp.sqrt(fan_in)
        w = jax.random.uniform(kw, (fan_out, fan_in), jnp.float32, -bound, bound)
        b = jax.random.uniform(kb, (fan_out, 1), jnp.float32, -bound, bound)
        params += [w, b]
    return tuple(params)


def net_forward_ref(x, params):
    """Pure-JAX reference for correctness checking."""
    w1, b1, w2, b2, w3, b3, w4, b4 = params
    h = jnp.dot(x, w1.T) + b1[:, 0]
    h = jnp.where(h > 0, h, LEAKY_SLOPE * h)
    h = jnp.maximum(jnp.dot(h, w2.T) + b2[:, 0], 0.0)
    h = jnp.dot(h, w3.T) + b3[:, 0]
    h = jnp.where(h > 0, h, LEAKY_SLOPE * h)
    h = jnp.dot(h, w4.T) + b4[:, 0]
    return jax.nn.sigmoid(h)


if __name__ == "__main__":
    key = jax.random.PRNGKey(0)
    kx, kp = jax.random.split(key)
    params = init_params(kp)

    # Small batch: pads up to one 128-lane tile, single grid step. f32 path
    # for a tight-tolerance correctness check.
    B_small = 8
    x_small = jax.random.normal(kx, (B_small, INPUT_SIZE), dtype=jnp.float32)
    out_small = jax.block_until_ready(
        net_forward(x_small, params, compute_dtype=jnp.float32))
    ref_small = net_forward_ref(x_small, params)
    assert out_small.shape == (B_small, 1)
    assert jnp.allclose(out_small, ref_small, atol=1e-4, rtol=1e-4), \
        "f32 small-batch mismatch"

    # Batch not divisible by 128: exercises padding + a multi-step grid
    # (tile is capped at half the padded batch so the grid has >= 2 steps).
    B_big = 300
    x_big = jax.random.normal(jax.random.fold_in(kx, 1), (B_big, INPUT_SIZE),
                              dtype=jnp.float32)
    out_big_f32 = jax.block_until_ready(
        net_forward(x_big, params, compute_dtype=jnp.float32))
    ref_big = net_forward_ref(x_big, params)
    assert out_big_f32.shape == (B_big, 1)
    assert jnp.allclose(out_big_f32, ref_big, atol=1e-4, rtol=1e-4), \
        "f32 tiled-batch mismatch"

    # Default (bf16 weights/activations, f32 MXU accumulation) fast path.
    out_big_bf16 = jax.block_until_ready(net_forward(x_big, params))
    assert out_big_bf16.shape == (B_big, 1)
    assert jnp.allclose(out_big_bf16, ref_big, atol=5e-2, rtol=5e-2), \
        "bf16 default-path mismatch"

    print("KERNEL_OK")
</pallas_src>

<mosaic_0001>
module attributes {stable_mosaic.version = 11 : i64} {
  func.func @mlp_kernel(%arg0: i32, %arg1: memref<128x22xf32, #tpu.memory_space<vmem>>, %arg2: memref<512x22xf32, #tpu.memory_space<vmem>>, %arg3: memref<512x1xf32, #tpu.memory_space<vmem>>, %arg4: memref<128x512xf32, #tpu.memory_space<vmem>>, %arg5: memref<128x1xf32, #tpu.memory_space<vmem>>, %arg6: memref<32x128xf32, #tpu.memory_space<vmem>>, %arg7: memref<32x1xf32, #tpu.memory_space<vmem>>, %arg8: memref<32x1xf32, #tpu.memory_space<vmem>>, %arg9: memref<1x1xf32, #tpu.memory_space<vmem>>, %arg10: memref<1x128xf32, #tpu.memory_space<vmem>>) attributes {dimension_semantics = [#tpu.dimension_semantics<parallel>], iteration_bounds = array<i64: 1>, scalar_prefetch = 0 : i64, scratch_operands = 0 : i64, tpu.core_type = #tpu.core_type<tc>, window_params = [{transform_indices = @transform_0, window_bounds = array<i64: 128, 22>}, {pipeline_mode = #tpu.pipeline_mode<synchronous>, transform_indices = @transform_1, window_bounds = array<i64: 512, 22>}, {pipeline_mode = #tpu.pipeline_mode<synchronous>, transform_indices = @transform_2, window_bounds = array<i64: 512, 1>}, {pipeline_mode = #tpu.pipeline_mode<synchronous>, transform_indices = @transform_3, window_bounds = array<i64: 128, 512>}, {pipeline_mode = #tpu.pipeline_mode<synchronous>, transform_indices = @transform_4, window_bounds = array<i64: 128, 1>}, {pipeline_mode = #tpu.pipeline_mode<synchronous>, transform_indices = @transform_5, window_bounds = array<i64: 32, 128>}, {pipeline_mode = #tpu.pipeline_mode<synchronous>, transform_indices = @transform_6, window_bounds = array<i64: 32, 1>}, {pipeline_mode = #tpu.pipeline_mode<synchronous>, transform_indices = @transform_7, window_bounds = array<i64: 32, 1>}, {pipeline_mode = #tpu.pipeline_mode<synchronous>, transform_indices = @transform_8, window_bounds = array<i64: 1, 1>}, {transform_indices = @transform_9, window_bounds = array<i64: 1, 128>}]} {
    %c0 = arith.constant 0 : index
    %c0_0 = arith.constant 0 : index
    %0 = vector.load %arg1[%c0, %c0_0] : memref<128x22xf32, #tpu.memory_space<vmem>>, vector<128x22xf32>
    %c0_1 = arith.constant 0 : index
    %c0_2 = arith.constant 0 : index
    %1 = vector.load %arg2[%c0_1, %c0_2] : memref<512x22xf32, #tpu.memory_space<vmem>>, vector<512x22xf32>
    %cst = arith.constant dense<0.000000e+00> : vector<512x128xf32>
    %2 = tpu.matmul %1, %0, %cst {dimension_numbers = #tpu.dot_dimension_numbers<[1], [1], [0], [0], [0, 0, 1, 0], [], []>} : vector<512x22xf32>, vector<128x22xf32>, vector<512x128xf32> -> vector<512x128xf32>
    %c0_3 = arith.constant 0 : index
    %c0_4 = arith.constant 0 : index
    %3 = vector.load %arg3[%c0_3, %c0_4] : memref<512x1xf32, #tpu.memory_space<vmem>>, vector<512x1xf32>
    %4 = vector.broadcast %3 : vector<512x1xf32> to vector<512x128xf32>
    %5 = arith.addf %2, %4 : vector<512x128xf32>
    %cst_5 = arith.constant 0.00999999977 : f32
    %6 = vector.broadcast %cst_5 : f32 to vector<512x128xf32>
    %7 = arith.mulf %6, %5 : vector<512x128xf32>
    %8 = arith.maximumf %5, %7 : vector<512x128xf32>
    %c0_6 = arith.constant 0 : index
    %c0_7 = arith.constant 0 : index
    %9 = vector.load %arg4[%c0_6, %c0_7] : memref<128x512xf32, #tpu.memory_space<vmem>>, vector<128x512xf32>
    %cst_8 = arith.constant dense<0.000000e+00> : vector<128x128xf32>
    %10 = tpu.matmul %9, %8, %cst_8 {dimension_numbers = #tpu.dot_dimension_numbers<[1], [0], [0], [1], [0, 0, 1, 1], [], []>} : vector<128x512xf32>, vector<512x128xf32>, vector<128x128xf32> -> vector<128x128xf32>
    %c0_9 = arith.constant 0 : index
    %c0_10 = arith.constant 0 : index
    %11 = vector.load %arg5[%c0_9, %c0_10] : memref<128x1xf32, #tpu.memory_space<vmem>>, vector<128x1xf32>
    %12 = vector.broadcast %11 : vector<128x1xf32> to vector<128x128xf32>
    %13 = arith.addf %10, %12 : vector<128x128xf32>
    %cst_11 = arith.constant 0.000000e+00 : f32
    %14 = vector.broadcast %cst_11 : f32 to vector<128x128xf32>
    %15 = arith.maximumf %13, %14 : vector<128x128xf32>
    %c0_12 = arith.constant 0 : index
    %c0_13 = arith.constant 0 : index
    %16 = vector.load %arg6[%c0_12, %c0_13] : memref<32x128xf32, #tpu.memory_space<vmem>>, vector<32x128xf32>
    %cst_14 = arith.constant dense<0.000000e+00> : vector<32x128xf32>
    %17 = tpu.matmul %16, %15, %cst_14 {dimension_numbers = #tpu.dot_dimension_numbers<[1], [0], [0], [1], [0, 0, 1, 1], [], []>} : vector<32x128xf32>, vector<128x128xf32>, vector<32x128xf32> -> vector<32x128xf32>
    %c0_15 = arith.constant 0 : index
    %c0_16 = arith.constant 0 : index
    %18 = vector.load %arg7[%c0_15, %c0_16] : memref<32x1xf32, #tpu.memory_space<vmem>>, vector<32x1xf32>
    %19 = vector.broadcast %18 : vector<32x1xf32> to vector<32x128xf32>
    %20 = arith.addf %17, %19 : vector<32x128xf32>
    %cst_17 = arith.constant 0.00999999977 : f32
    %21 = vector.broadcast %cst_17 : f32 to vector<32x128xf32>
    %22 = arith.mulf %21, %20 : vector<32x128xf32>
    %23 = arith.maximumf %20, %22 : vector<32x128xf32>
    %c0_18 = arith.constant 0 : index
    %c0_19 = arith.constant 0 : index
    %24 = vector.load %arg8[%c0_18, %c0_19] : memref<32x1xf32, #tpu.memory_space<vmem>>, vector<32x1xf32>
    %25 = vector.broadcast %24 : vector<32x1xf32> to vector<32x128xf32>
    %26 = arith.mulf %23, %25 : vector<32x128xf32>
    %cst_20 = arith.constant dense<0.000000e+00> : vector<128xf32>
    %27 = vector.multi_reduction <add>, %26, %cst_20 [0] : vector<32x128xf32> to vector<128xf32>
    %28 = vector.shape_cast %27 : vector<128xf32> to vector<1x128xf32>
    %c0_21 = arith.constant 0 : index
    %c0_22 = arith.constant 0 : index
    %29 = vector.load %arg9[%c0_21, %c0_22] : memref<1x1xf32, #tpu.memory_space<vmem>>, vector<1x1xf32>
    %30 = vector.broadcast %29 : vector<1x1xf32> to vector<1x128xf32>
    %31 = arith.addf %28, %30 : vector<1x128xf32>
    %32 = arith.negf %31 : vector<1x128xf32>
    %33 = math.exp %32 : vector<1x128xf32>
    %cst_23 = arith.constant 1.000000e+00 : f32
    %34 = vector.broadcast %cst_23 : f32 to vector<1x128xf32>
    %35 = arith.addf %34, %33 : vector<1x128xf32>
    %36 = arith.divf %34, %35 : vector<1x128xf32>
    %c0_24 = arith.constant 0 : index
    %c0_25 = arith.constant 0 : index
    %37 = vector.load %arg10[%c0_24, %c0_25] : memref<1x128xf32, #tpu.memory_space<vmem>>, vector<1x128xf32>
    tpu.vector_store %arg10[%c0_24, %c0_25], %36 {strides = array<i32>} : memref<1x128xf32, #tpu.memory_space<vmem>>, vector<1x128xf32>,
    return
  }
  func.func @transform_0(%arg0: i32) -> (i32, i32) {
    %c0_i32 = arith.constant 0 : i32
    %c0_i32_0 = arith.constant 0 : i32
    return %arg0, %c0_i32 : i32, i32
  }
  func.func @transform_1(%arg0: i32) -> (i32, i32) {
    %c0_i32 = arith.constant 0 : i32
    %c0_i32_0 = arith.constant 0 : i32
    %c0_i32_1 = arith.constant 0 : i32
    return %c0_i32, %c0_i32_0 : i32, i32
  }
  func.func @transform_2(%arg0: i32) -> (i32, i32) {
    %c0_i32 = arith.constant 0 : i32
    %c0_i32_0 = arith.constant 0 : i32
    %c0_i32_1 = arith.constant 0 : i32
    return %c0_i32, %c0_i32_0 : i32, i32
  }
  func.func @transform_3(%arg0: i32) -> (i32, i32) {
    %c0_i32 = arith.constant 0 : i32
    %c0_i32_0 = arith.constant 0 : i32
    %c0_i32_1 = arith.constant 0 : i32
    return %c0_i32, %c0_i32_0 : i32, i32
  }
  func.func @transform_4(%arg0: i32) -> (i32, i32) {
    %c0_i32 = arith.constant 0 : i32
    %c0_i32_0 = arith.constant 0 : i32
    %c0_i32_1 = arith.constant 0 : i32
    return %c0_i32, %c0_i32_0 : i32, i32
  }
  func.func @transform_5(%arg0: i32) -> (i32, i32) {
    %c0_i32 = arith.constant 0 : i32
    %c0_i32_0 = arith.constant 0 : i32
    %c0_i32_1 = arith.constant 0 : i32
    return %c0_i32, %c0_i32_0 : i32, i32
  }
  func.func @transform_6(%arg0: i32) -> (i32, i32) {
    %c0_i32 = arith.constant 0 : i32
    %c0_i32_0 = arith.constant 0 : i32
    %c0_i32_1 = arith.constant 0 : i32
    return %c0_i32, %c0_i32_0 : i32, i32
  }
  func.func @transform_7(%arg0: i32) -> (i32, i32) {
    %c0_i32 = arith.constant 0 : i32
    %c0_i32_0 = arith.constant 0 : i32
    %c0_i32_1 = arith.constant 0 : i32
    return %c0_i32, %c0_i32_0 : i32, i32
  }
  func.func @transform_8(%arg0: i32) -> (i32, i32) {
    %c0_i32 = arith.constant 0 : i32
    %c0_i32_0 = arith.constant 0 : i32
    %c0_i32_1 = arith.constant 0 : i32
    return %c0_i32, %c0_i32_0 : i32, i32
  }
  func.func @transform_9(%arg0: i32) -> (i32, i32) {
    %c0_i32 = arith.constant 0 : i32
    %c0_i32_0 = arith.constant 0 : i32
    return %c0_i32, %arg0 : i32, i32
  }
}

</mosaic_0001>

<llo_original>
// kernel: tpu_custom_call.1
$region0: #{tpu_custom_call.1}
  #allocation0 [shape = 'u32[]', space=smem, size = 0x4, offset = 0x4, fixed_abs, tag = 'smem constant byte address 0x4 - core index']
  #allocation1 [shape = 'u32[144,128]{1,0:T(1,128)}', space=vmem, size = 0x12000, scoped, tag = 'internal scratch']
  #allocation2 [shape = 'f32[1,1]{1,0:T(1,128)S(1)}', space=vmem, size = 0x200, scoped, tag = 'scoped memory for tpu_custom_call.1']
  %s0 = inlined_call_operand.vmem [shape: f32[128,22], index: 0, kind: input, shape index: {}]
  %s1 = inlined_call_operand.vmem [shape: f32[512,22], index: 1, kind: input, shape index: {}]
  %s2 = inlined_call_operand.vmem [shape: f32[512,1], index: 2, kind: input, shape index: {}]
  %s3 = inlined_call_operand.vmem [shape: f32[128,512], index: 3, kind: input, shape index: {}]
  %s4 = inlined_call_operand.vmem [shape: f32[128,1], index: 4, kind: input, shape index: {}]
  %s5 = inlined_call_operand.vmem [shape: f32[32,128], index: 5, kind: input, shape index: {}]
  %s6 = inlined_call_operand.vmem [shape: f32[32,1], index: 6, kind: input, shape index: {}]
  %s7 = inlined_call_operand.vmem [shape: f32[32,1], index: 7, kind: input, shape index: {}]
  %s8 = inlined_call_operand.<no memory space> [shape: f32[1,1], index: 8, kind: input, shape index: {}]
  %s9 = inlined_call_operand.hbm [shape: f32[1,128], index: 9, kind: output, shape index: {}]
  %s10 = sld [smem:[#allocation0]]
  $region46: #{tpu_custom_call.1} parent=0
    _
  %s12 = ssub.s32 1, %s10
  %s13 = scalar_select 0, %s12, %s10
  %v14 = vstv %s8
  %15 = vst [vmem:[#allocation2] sm:$0x1] %v14
  $region1: #{tpu_custom_call.1} parent=0
    #allocation3 [shape = 'u8[512]{0}', space=vmem, size = 0x400, scoped, tag = 'output window, operand 0, single buffered']
    #allocation4 [shape = 's32[1]{0}', space=sflag, size = 0x4, scoped, tag = 'scoped memory for tpu_custom_call.1']
    %16 = vsyncpa [#allocation4], 0
    // Predicated region
    $region2: #{tpu_custom_call.1} parent=1 // pred_check
      _
    $region3: #{tpu_custom_call.1} parent=1 // pred_check_branch
      %18 = sbr.rel (0) target = $region5
    $region4: #{tpu_custom_call.1} parent=1 // pred_region
      _
    $region5: #{tpu_custom_call.1} parent=1 // pred_fallthru
      _
    // Predicated region
    $region6: #{tpu_custom_call.1} parent=1 // pred_check
      _
    $region7: #{tpu_custom_call.1} parent=1 // pred_check_branch
      %20 = sbr.rel (0) target = $region9
    $region8: #{tpu_custom_call.1} parent=1 // pred_region
      _
    $region9: #{tpu_custom_call.1} parent=1 // pred_fallthru
      _
    // Predicated region
    $region10: #{tpu_custom_call.1} parent=1 // pred_check
      _
    $region11: #{tpu_custom_call.1} parent=1 // pred_check_branch
      %22 = sbr.rel (0) target = $region13
    $region12: #{tpu_custom_call.1} parent=1 // pred_region
      _
    $region13: #{tpu_custom_call.1} parent=1 // pred_fallthru
      _
    // Predicated region
    $region14: #{tpu_custom_call.1} parent=1 // pred_check
      _
    $region15: #{tpu_custom_call.1} parent=1 // pred_check_branch
      %24 = sbr.rel (0) target = $region17
    $region16: #{tpu_custom_call.1} parent=1 // pred_region
      _
    $region17: #{tpu_custom_call.1} parent=1 // pred_fallthru
      _
    // Predicated region
    $region18: #{tpu_custom_call.1} parent=1 // pred_check
      _
    $region19: #{tpu_custom_call.1} parent=1 // pred_check_branch
      %26 = sbr.rel (0) target = $region21
    $region20: #{tpu_custom_call.1} parent=1 // pred_region
      _
    $region21: #{tpu_custom_call.1} parent=1 // pred_fallthru
      _
    // Predicated region
    $region22: #{tpu_custom_call.1} parent=1 // pred_check
      _
    $region23: #{tpu_custom_call.1} parent=1 // pred_check_branch
      %28 = sbr.rel (0) target = $region25
    $region24: #{tpu_custom_call.1} parent=1 // pred_region
      _
    $region25: #{tpu_custom_call.1} parent=1 // pred_fallthru
      _
    // Predicated region
    $region26: #{tpu_custom_call.1} parent=1 // pred_check
      _
    $region27: #{tpu_custom_call.1} parent=1 // pred_check_branch
      %30 = sbr.rel (0) target = $region29
    $region28: #{tpu_custom_call.1} parent=1 // pred_region
      _
    $region29: #{tpu_custom_call.1} parent=1 // pred_fallthru
      _
    // Predicated region
    $region30: #{tpu_custom_call.1} parent=1 // pred_check
      _
    $region31: #{tpu_custom_call.1} parent=1 // pred_check_branch
      %32 = sbr.rel (0) target = $region33
    $region32: #{tpu_custom_call.1} parent=1 // pred_region
      _
    $region33: #{tpu_custom_call.1} parent=1 // pred_fallthru
      _
    // Predicated region
    $region34: #{tpu_custom_call.1} parent=1 // pred_check
      _
    $region35: #{tpu_custom_call.1} parent=1 // pred_check_branch
      %34 = sbr.rel (0) target = $region37
    $region36: #{tpu_custom_call.1} parent=1 // pred_region
      _
    $region37: #{tpu_custom_call.1} parent=1 // pred_fallthru
      _
    %v35 = vld [vmem:[%s0] sm:$0xff]
    %v36 = vld [vmem:[%s0 + $0x8] sm:$0xff]
    %v37 = vld [vmem:[%s0 + $0x10] sm:$0xff]
    %v38 = vld [vmem:[%s0 + $0x18] sm:$0xff]
    %v39 = vld [vmem:[%s0 + $0x20] sm:$0xff]
    %v40 = vld [vmem:[%s0 + $0x28] sm:$0xff]
    %v41 = vld [vmem:[%s0 + $0x30] sm:$0xff]
    %v42 = vld [vmem:[%s0 + $0x38] sm:$0xff]
    %v43 = vld [vmem:[%s0 + $0x40] sm:$0xff]
    %v44 = vld [vmem:[%s0 + $0x48] sm:$0xff]
    %v45 = vld [vmem:[%s0 + $0x50] sm:$0xff]
    %v46 = vld [vmem:[%s0 + $0x58] sm:$0xff]
    %v47 = vld [vmem:[%s0 + $0x60] sm:$0xff]
    %v48 = vld [vmem:[%s0 + $0x68] sm:$0xff]
    %v49 = vld [vmem:[%s0 + $0x70] sm:$0xff]
    %v50 = vld [vmem:[%s0 + $0x78] sm:$0xff]
    %v51 = vld [vmem:[%s1] sm:$0xff]
    %v52 = vld [vmem:[%s1 + $0x8] sm:$0xff]
    %v53 = vld [vmem:[%s1 + $0x10] sm:$0xff]
    %v54 = vld [vmem:[%s1 + $0x18] sm:$0xff]
    %v55 = vld [vmem:[%s1 + $0x20] sm:$0xff]
    %v56 = vld [vmem:[%s1 + $0x28] sm:$0xff]
    %v57 = vld [vmem:[%s1 + $0x30] sm:$0xff]
    %v58 = vld [vmem:[%s1 + $0x38] sm:$0xff]
    %v59 = vld [vmem:[%s1 + $0x40] sm:$0xff]
    %v60 = vld [vmem:[%s1 + $0x48] sm:$0xff]
    %v61 = vld [vmem:[%s1 + $0x50] sm:$0xff]
    %v62 = vld [vmem:[%s1 + $0x58] sm:$0xff]
    %v63 = vld [vmem:[%s1 + $0x60] sm:$0xff]
    %v64 = vld [vmem:[%s1 + $0x68] sm:$0xff]
    %v65 = vld [vmem:[%s1 + $0x70] sm:$0xff]
    %v66 = vld [vmem:[%s1 + $0x78] sm:$0xff]
    %v67 = vld [vmem:[%s1 + $0x80] sm:$0xff]
    %v68 = vld [vmem:[%s1 + $0x88] sm:$0xff]
    %v69 = vld [vmem:[%s1 + $0x90] sm:$0xff]
    %v70 = vld [vmem:[%s1 + $0x98] sm:$0xff]
    %v71 = vld [vmem:[%s1 + $0xa0] sm:$0xff]
    %v72 = vld [vmem:[%s1 + $0xa8] sm:$0xff]
    %v73 = vld [vmem:[%s1 + $0xb0] sm:$0xff]
    %v74 = vld [vmem:[%s1 + $0xb8] sm:$0xff]
    %v75 = vld [vmem:[%s1 + $0xc0] sm:$0xff]
    %v76 = vld [vmem:[%s1 + $0xc8] sm:$0xff]
    %v77 = vld [vmem:[%s1 + $0xd0] sm:$0xff]
    %v78 = vld [vmem:[%s1 + $0xd8] sm:$0xff]
    %v79 = vld [vmem:[%s1 + $0xe0] sm:$0xff]
    %v80 = vld [vmem:[%s1 + $0xe8] sm:$0xff]
    %v81 = vld [vmem:[%s1 + $0xf0] sm:$0xff]
    %v82 = vld [vmem:[%s1 + $0xf8] sm:$0xff]
    %v83 = vld [vmem:[%s1 + $0x100] sm:$0xff]
    %v84 = vld [vmem:[%s1 + $0x108] sm:$0xff]
    %v85 = vld [vmem:[%s1 + $0x110] sm:$0xff]
    %v86 = vld [vmem:[%s1 + $0x118] sm:$0xff]
    %v87 = vld [vmem:[%s1 + $0x120] sm:$0xff]
    %v88 = vld [vmem:[%s1 + $0x128] sm:$0xff]
    %v89 = vld [vmem:[%s1 + $0x130] sm:$0xff]
    %v90 = vld [vmem:[%s1 + $0x138] sm:$0xff]
    %v91 = vld [vmem:[%s1 + $0x140] sm:$0xff]
    %v92 = vld [vmem:[%s1 + $0x148] sm:$0xff]
    %v93 = vld [vmem:[%s1 + $0x150] sm:$0xff]
    %v94 = vld [vmem:[%s1 + $0x158] sm:$0xff]
    %v95 = vld [vmem:[%s1 + $0x160] sm:$0xff]
    %v96 = vld [vmem:[%s1 + $0x168] sm:$0xff]
    %v97 = vld [vmem:[%s1 + $0x170] sm:$0xff]
    %v98 = vld [vmem:[%s1 + $0x178] sm:$0xff]
    %v99 = vld [vmem:[%s1 + $0x180] sm:$0xff]
    %v100 = vld [vmem:[%s1 + $0x188] sm:$0xff]
    %v101 = vld [vmem:[%s1 + $0x190] sm:$0xff]
    %v102 = vld [vmem:[%s1 + $0x198] sm:$0xff]
    %v103 = vld [vmem:[%s1 + $0x1a0] sm:$0xff]
    %v104 = vld [vmem:[%s1 + $0x1a8] sm:$0xff]
    %v105 = vld [vmem:[%s1 + $0x1b0] sm:$0xff]
    %v106 = vld [vmem:[%s1 + $0x1b8] sm:$0xff]
    %v107 = vld [vmem:[%s1 + $0x1c0] sm:$0xff]
    %v108 = vld [vmem:[%s1 + $0x1c8] sm:$0xff]
    %v109 = vld [vmem:[%s1 + $0x1d0] sm:$0xff]
    %v110 = vld [vmem:[%s1 + $0x1d8] sm:$0xff]
    %v111 = vld [vmem:[%s1 + $0x1e0] sm:$0xff]
    %v112 = vld [vmem:[%s1 + $0x1e8] sm:$0xff]
    %v113 = vld [vmem:[%s1 + $0x1f0] sm:$0xff]
    %v114 = vld [vmem:[%s1 + $0x1f8] sm:$0xff]
    %v115 = vld [vmem:[%s2] sm:$0xff]
    %v116 = vld [vmem:[%s2 + $0x8] sm:$0xff]
    %v117 = vld [vmem:[%s2 + $0x10] sm:$0xff]
    %v118 = vld [vmem:[%s2 + $0x18] sm:$0xff]
    %v119 = vld [vmem:[%s2 + $0x20] sm:$0xff]
    %v120 = vld [vmem:[%s2 + $0x28] sm:$0xff]
    %v121 = vld [vmem:[%s2 + $0x30] sm:$0xff]
    %v122 = vld [vmem:[%s2 + $0x38] sm:$0xff]
    %v123 = vld [vmem:[%s2 + $0x40] sm:$0xff]
    %v124 = vld [vmem:[%s2 + $0x48] sm:$0xff]
    %v125 = vld [vmem:[%s2 + $0x50] sm:$0xff]
    %v126 = vld [vmem:[%s2 + $0x58] sm:$0xff]
    %v127 = vld [vmem:[%s2 + $0x60] sm:$0xff]
    %v128 = vld [vmem:[%s2 + $0x68] sm:$0xff]
    %v129 = vld [vmem:[%s2 + $0x70] sm:$0xff]
    %v130 = vld [vmem:[%s2 + $0x78] sm:$0xff]
    %v131 = vld [vmem:[%s2 + $0x80] sm:$0xff]
    %v132 = vld [vmem:[%s2 + $0x88] sm:$0xff]
    %v133 = vld [vmem:[%s2 + $0x90] sm:$0xff]
    %v134 = vld [vmem:[%s2 + $0x98] sm:$0xff]
    %v135 = vld [vmem:[%s2 + $0xa0] sm:$0xff]
    %v136 = vld [vmem:[%s2 + $0xa8] sm:$0xff]
    %v137 = vld [vmem:[%s2 + $0xb0] sm:$0xff]
    %v138 = vld [vmem:[%s2 + $0xb8] sm:$0xff]
    %v139 = vld [vmem:[%s2 + $0xc0] sm:$0xff]
    %v140 = vld [vmem:[%s2 + $0xc8] sm:$0xff]
    %v141 = vld [vmem:[%s2 + $0xd0] sm:$0xff]
    %v142 = vld [vmem:[%s2 + $0xd8] sm:$0xff]
    %v143 = vld [vmem:[%s2 + $0xe0] sm:$0xff]
    %v144 = vld [vmem:[%s2 + $0xe8] sm:$0xff]
    %v145 = vld [vmem:[%s2 + $0xf0] sm:$0xff]
    %v146 = vld [vmem:[%s2 + $0xf8] sm:$0xff]
    %v147 = vld [vmem:[%s2 + $0x100] sm:$0xff]
    %v148 = vld [vmem:[%s2 + $0x108] sm:$0xff]
    %v149 = vld [vmem:[%s2 + $0x110] sm:$0xff]
    %v150 = vld [vmem:[%s2 + $0x118] sm:$0xff]
    %v151 = vld [vmem:[%s2 + $0x120] sm:$0xff]
    %v152 = vld [vmem:[%s2 + $0x128] sm:$0xff]
    %v153 = vld [vmem:[%s2 + $0x130] sm:$0xff]
    %v154 = vld [vmem:[%s2 + $0x138] sm:$0xff]
    %v155 = vld [vmem:[%s2 + $0x140] sm:$0xff]
    %v156 = vld [vmem:[%s2 + $0x148] sm:$0xff]
    %v157 = vld [vmem:[%s2 + $0x150] sm:$0xff]
    %v158 = vld [vmem:[%s2 + $0x158] sm:$0xff]
    %v159 = vld [vmem:[%s2 + $0x160] sm:$0xff]
    %v160 = vld [vmem:[%s2 + $0x168] sm:$0xff]
    %v161 = vld [vmem:[%s2 + $0x170] sm:$0xff]
    %v162 = vld [vmem:[%s2 + $0x178] sm:$0xff]
    %v163 = vld [vmem:[%s2 + $0x180] sm:$0xff]
    %v164 = vld [vmem:[%s2 + $0x188] sm:$0xff]
    %v165 = vld [vmem:[%s2 + $0x190] sm:$0xff]
    %v166 = vld [vmem:[%s2 + $0x198] sm:$0xff]
    %v167 = vld [vmem:[%s2 + $0x1a0] sm:$0xff]
    %v168 = vld [vmem:[%s2 + $0x1a8] sm:$0xff]
    %v169 = vld [vmem:[%s2 + $0x1b0] sm:$0xff]
    %v170 = vld [vmem:[%s2 + $0x1b8] sm:$0xff]
    %v171 = vld [vmem:[%s2 + $0x1c0] sm:$0xff]
    %v172 = vld [vmem:[%s2 + $0x1c8] sm:$0xff]
    %v173 = vld [vmem:[%s2 + $0x1d0] sm:$0xff]
    %v174 = vld [vmem:[%s2 + $0x1d8] sm:$0xff]
    %v175 = vld [vmem:[%s2 + $0x1e0] sm:$0xff]
    %v176 = vld [vmem:[%s2 + $0x1e8] sm:$0xff]
    %v177 = vld [vmem:[%s2 + $0x1f0] sm:$0xff]
    %v178 = vld [vmem:[%s2 + $0x1f8] sm:$0xff]
    %180 = vset.pattern.permute.xlu0 0
    %181 = vperm.xlu0 %180, %v115
    %v182 = vpop.permute.xlu0 %181
    %185 = vset.pattern.permute.xlu0 0
    %186 = vperm.xlu0 %185, %v116
    %v187 = vpop.permute.xlu0 %186
    %190 = vset.pattern.permute.xlu0 0
    %191 = vperm.xlu0 %190, %v117
    %v192 = vpop.permute.xlu0 %191
    %195 = vset.pattern.permute.xlu0 0
    %196 = vperm.xlu0 %195, %v118
    %v197 = vpop.permute.xlu0 %196
    %200 = vset.pattern.permute.xlu0 0
    %201 = vperm.xlu0 %200, %v119
    %v202 = vpop.permute.xlu0 %201
    %205 = vset.pattern.permute.xlu0 0
    %206 = vperm.xlu0 %205, %v120
    %v207 = vpop.permute.xlu0 %206
    %210 = vset.pattern.permute.xlu0 0
    %211 = vperm.xlu0 %210, %v121
    %v212 = vpop.permute.xlu0 %211
    %215 = vset.pattern.permute.xlu0 0
    %216 = vperm.xlu0 %215, %v122
    %v217 = vpop.permute.xlu0 %216
    %220 = vset.pattern.permute.xlu0 0
    %221 = vperm.xlu0 %220, %v123
    %v222 = vpop.permute.xlu0 %221
    %225 = vset.pattern.permute.xlu0 0
    %226 = vperm.xlu0 %225, %v124
    %v227 = vpop.permute.xlu0 %226
    %230 = vset.pattern.permute.xlu0 0
    %231 = vperm.xlu0 %230, %v125
    %v232 = vpop.permute.xlu0 %231
    %235 = vset.pattern.permute.xlu0 0
    %236 = vperm.xlu0 %235, %v126
    %v237 = vpop.permute.xlu0 %236
    %240 = vset.pattern.permute.xlu0 0
    %241 = vperm.xlu0 %240, %v127
    %v242 = vpop.permute.xlu0 %241
    %245 = vset.pattern.permute.xlu0 0
    %246 = vperm.xlu0 %245, %v128
    %v247 = vpop.permute.xlu0 %246
    %250 = vset.pattern.permute.xlu0 0
    %251 = vperm.xlu0 %250, %v129
    %v252 = vpop.permute.xlu0 %251
    %255 = vset.pattern.permute.xlu0 0
    %256 = vperm.xlu0 %255, %v130
    %v257 = vpop.permute.xlu0 %256
    %260 = vset.pattern.permute.xlu0 0
    %261 = vperm.xlu0 %260, %v131
    %v262 = vpop.permute.xlu0 %261
    %265 = vset.pattern.permute.xlu0 0
    %266 = vperm.xlu0 %265, %v132
    %v267 = vpop.permute.xlu0 %266
    %270 = vset.pattern.permute.xlu0 0
    %271 = vperm.xlu0 %270, %v133
    %v272 = vpop.permute.xlu0 %271
    %275 = vset.pattern.permute.xlu0 0
    %276 = vperm.xlu0 %275, %v134
    %v277 = vpop.permute.xlu0 %276
    %280 = vset.pattern.permute.xlu0 0
    %281 = vperm.xlu0 %280, %v135
    %v282 = vpop.permute.xlu0 %281
    %285 = vset.pattern.permute.xlu0 0
    %286 = vperm.xlu0 %285, %v136
    %v287 = vpop.permute.xlu0 %286
    %290 = vset.pattern.permute.xlu0 0
    %291 = vperm.xlu0 %290, %v137
    %v292 = vpop.permute.xlu0 %291
    %295 = vset.pattern.permute.xlu0 0
    %296 = vperm.xlu0 %295, %v138
    %v297 = vpop.permute.xlu0 %296
    %300 = vset.pattern.permute.xlu0 0
    %301 = vperm.xlu0 %300, %v139
    %v302 = vpop.permute.xlu0 %301
    %305 = vset.pattern.permute.xlu0 0
    %306 = vperm.xlu0 %305, %v140
    %v307 = vpop.permute.xlu0 %306
    %310 = vset.pattern.permute.xlu0 0
    %311 = vperm.xlu0 %310, %v141
    %v312 = vpop.permute.xlu0 %311
    %315 = vset.pattern.permute.xlu0 0
    %316 = vperm.xlu0 %315, %v142
    %v317 = vpop.permute.xlu0 %316
    %320 = vset.pattern.permute.xlu0 0
    %321 = vperm.xlu0 %320, %v143
    %v322 = vpop.permute.xlu0 %321
    %325 = vset.pattern.permute.xlu0 0
    %326 = vperm.xlu0 %325, %v144
    %v327 = vpop.permute.xlu0 %326
    %330 = vset.pattern.permute.xlu0 0
    %331 = vperm.xlu0 %330, %v145
    %v332 = vpop.permute.xlu0 %331
    %335 = vset.pattern.permute.xlu0 0
    %336 = vperm.xlu0 %335, %v146
    %v337 = vpop.permute.xlu0 %336
    %340 = vset.pattern.permute.xlu0 0
    %341 = vperm.xlu0 %340, %v147
    %v342 = vpop.permute.xlu0 %341
    %345 = vset.pattern.permute.xlu0 0
    %346 = vperm.xlu0 %345, %v148
    %v347 = vpop.permute.xlu0 %346
    %350 = vset.pattern.permute.xlu0 0
    %351 = vperm.xlu0 %350, %v149
    %v352 = vpop.permute.xlu0 %351
    %355 = vset.pattern.permute.xlu0 0
    %356 = vperm.xlu0 %355, %v150
    %v357 = vpop.permute.xlu0 %356
    %360 = vset.pattern.permute.xlu0 0
    %361 = vperm.xlu0 %360, %v151
    %v362 = vpop.permute.xlu0 %361
    %365 = vset.pattern.permute.xlu0 0
    %366 = vperm.xlu0 %365, %v152
    %v367 = vpop.permute.xlu0 %366
    %370 = vset.pattern.permute.xlu0 0
    %371 = vperm.xlu0 %370, %v153
    %v372 = vpop.permute.xlu0 %371
    %375 = vset.pattern.permute.xlu0 0
    %376 = vperm.xlu0 %375, %v154
    %v377 = vpop.permute.xlu0 %376
    %380 = vset.pattern.permute.xlu0 0
    %381 = vperm.xlu0 %380, %v155
    %v382 = vpop.permute.xlu0 %381
    %385 = vset.pattern.permute.xlu0 0
    %386 = vperm.xlu0 %385, %v156
    %v387 = vpop.permute.xlu0 %386
    %390 = vset.pattern.permute.xlu0 0
    %391 = vperm.xlu0 %390, %v157
    %v392 = vpop.permute.xlu0 %391
    %395 = vset.pattern.permute.xlu0 0
    %396 = vperm.xlu0 %395, %v158
    %v397 = vpop.permute.xlu0 %396
    %400 = vset.pattern.permute.xlu0 0
    %401 = vperm.xlu0 %400, %v159
    %v402 = vpop.permute.xlu0 %401
    %405 = vset.pattern.permute.xlu0 0
    %406 = vperm.xlu0 %405, %v160
    %v407 = vpop.permute.xlu0 %406
    %410 = vset.pattern.permute.xlu0 0
    %411 = vperm.xlu0 %410, %v161
    %v412 = vpop.permute.xlu0 %411
    %415 = vset.pattern.permute.xlu0 0
    %416 = vperm.xlu0 %415, %v162
    %v417 = vpop.permute.xlu0 %416
    %420 = vset.pattern.permute.xlu0 0
    %421 = vperm.xlu0 %420, %v163
    %v422 = vpop.permute.xlu0 %421
    %425 = vset.pattern.permute.xlu0 0
    %426 = vperm.xlu0 %425, %v164
    %v427 = vpop.permute.xlu0 %426
    %430 = vset.pattern.permute.xlu0 0
    %431 = vperm.xlu0 %430, %v165
    %v432 = vpop.permute.xlu0 %431
    %435 = vset.pattern.permute.xlu0 0
    %436 = vperm.xlu0 %435, %v166
    %v437 = vpop.permute.xlu0 %436
    %440 = vset.pattern.permute.xlu0 0
    %441 = vperm.xlu0 %440, %v167
    %v442 = vpop.permute.xlu0 %441
    %445 = vset.pattern.permute.xlu0 0
    %446 = vperm.xlu0 %445, %v168
    %v447 = vpop.permute.xlu0 %446
    %450 = vset.pattern.permute.xlu0 0
    %451 = vperm.xlu0 %450, %v169
    %v452 = vpop.permute.xlu0 %451
    %455 = vset.pattern.permute.xlu0 0
    %456 = vperm.xlu0 %455, %v170
    %v457 = vpop.permute.xlu0 %456
    %460 = vset.pattern.permute.xlu0 0
    %461 = vperm.xlu0 %460, %v171
    %v462 = vpop.permute.xlu0 %461
    %465 = vset.pattern.permute.xlu0 0
    %466 = vperm.xlu0 %465, %v172
    %v467 = vpop.permute.xlu0 %466
    %470 = vset.pattern.permute.xlu0 0
    %471 = vperm.xlu0 %470, %v173
    %v472 = vpop.permute.xlu0 %471
    %475 = vset.pattern.permute.xlu0 0
    %476 = vperm.xlu0 %475, %v174
    %v477 = vpop.permute.xlu0 %476
    %480 = vset.pattern.permute.xlu0 0
    %481 = vperm.xlu0 %480, %v175
    %v482 = vpop.permute.xlu0 %481
    %485 = vset.pattern.permute.xlu0 0
    %486 = vperm.xlu0 %485, %v176
    %v487 = vpop.permute.xlu0 %486
    %490 = vset.pattern.permute.xlu0 0
    %491 = vperm.xlu0 %490, %v177
    %v492 = vpop.permute.xlu0 %491
    %495 = vset.pattern.permute.xlu0 0
    %496 = vperm.xlu0 %495, %v178
    %v497 = vpop.permute.xlu0 %496
    %vm499 = vcmask 179200
    %v501 = vsel %vm499, %v51, 0
    %v504 = vsel %vm499, %v52, 0
    %v507 = vsel %vm499, %v53, 0
    %v510 = vsel %vm499, %v54, 0
    %v513 = vsel %vm499, %v55, 0
    %v516 = vsel %vm499, %v56, 0
    %v519 = vsel %vm499, %v57, 0
    %v522 = vsel %vm499, %v58, 0
    %v525 = vsel %vm499, %v59, 0
    %v528 = vsel %vm499, %v60, 0
    %v531 = vsel %vm499, %v61, 0
    %v534 = vsel %vm499, %v62, 0
    %v537 = vsel %vm499, %v63, 0
    %v540 = vsel %vm499, %v64, 0
    %v543 = vsel %vm499, %v65, 0
    %v546 = vsel %vm499, %v66, 0
    %v549 = vsel %vm499, %v67, 0
    %v552 = vsel %vm499, %v68, 0
    %v555 = vsel %vm499, %v69, 0
    %v558 = vsel %vm499, %v70, 0
    %v561 = vsel %vm499, %v71, 0
    %v564 = vsel %vm499, %v72, 0
    %v567 = vsel %vm499, %v73, 0
    %v570 = vsel %vm499, %v74, 0
    %v573 = vsel %vm499, %v75, 0
    %v576 = vsel %vm499, %v76, 0
    %v579 = vsel %vm499, %v77, 0
    %v582 = vsel %vm499, %v78, 0
    %v585 = vsel %vm499, %v79, 0
    %v588 = vsel %vm499, %v80, 0
    %v591 = vsel %vm499, %v81, 0
    %v594 = vsel %vm499, %v82, 0
    %v597 = vsel %vm499, %v83, 0
    %v600 = vsel %vm499, %v84, 0
    %v603 = vsel %vm499, %v85, 0
    %v606 = vsel %vm499, %v86, 0
    %v609 = vsel %vm499, %v87, 0
    %v612 = vsel %vm499, %v88, 0
    %v615 = vsel %vm499, %v89, 0
    %v618 = vsel %vm499, %v90, 0
    %v621 = vsel %vm499, %v91, 0
    %v624 = vsel %vm499, %v92, 0
    %v627 = vsel %vm499, %v93, 0
    %v630 = vsel %vm499, %v94, 0
    %v633 = vsel %vm499, %v95, 0
    %v636 = vsel %vm499, %v96, 0
    %v639 = vsel %vm499, %v97, 0
    %v642 = vsel %vm499, %v98, 0
    %v645 = vsel %vm499, %v99, 0
    %v648 = vsel %vm499, %v100, 0
    %v651 = vsel %vm499, %v101, 0
    %v654 = vsel %vm499, %v102, 0
    %v657 = vsel %vm499, %v103, 0
    %v660 = vsel %vm499, %v104, 0
    %v663 = vsel %vm499, %v105, 0
    %v666 = vsel %vm499, %v106, 0
    %v669 = vsel %vm499, %v107, 0
    %v672 = vsel %vm499, %v108, 0
    %v675 = vsel %vm499, %v109, 0
    %v678 = vsel %vm499, %v110, 0
    %v681 = vsel %vm499, %v111, 0
    %v684 = vsel %vm499, %v112, 0
    %v687 = vsel %vm499, %v113, 0
    %v690 = vsel %vm499, %v114, 0
    %v693 = vsel %vm499, %v35, 0
    %v696 = vsel %vm499, %v36, 0
    %v699 = vsel %vm499, %v37, 0
    %v702 = vsel %vm499, %v38, 0
    %v705 = vsel %vm499, %v39, 0
    %v708 = vsel %vm499, %v40, 0
    %v711 = vsel %vm499, %v41, 0
    %v714 = vsel %vm499, %v42, 0
    %v717 = vsel %vm499, %v43, 0
    %v720 = vsel %vm499, %v44, 0
    %v723 = vsel %vm499, %v45, 0
    %v726 = vsel %vm499, %v46, 0
    %v729 = vsel %vm499, %v47, 0
    %v732 = vsel %vm499, %v48, 0
    %v735 = vsel %vm499, %v49, 0
    %v738 = vsel %vm499, %v50, 0
    %740 = vmatprep.subr.mxu0 0.0
    %741 = vmatpush1.xpose.msra.mxu0 %v693
    %742 = vmatprep.subr.mxu0 0.0
    %743 = vmatpush1.xpose.msra.mxu0 %v696
    %744 = vmatprep.subr.mxu0 0.0
    %745 = vmatpush1.xpose.msra.mxu0 %v699
    %746 = vmatprep.subr.mxu0 0.0
    %747 = vmatpush1.xpose.msra.mxu0 %v702
    %748 = vmatprep.subr.mxu0 0.0
    %749 = vmatpush1.xpose.msra.mxu0 %v705
    %750 = vmatprep.subr.mxu0 0.0
    %751 = vmatpush1.xpose.msra.mxu0 %v708
    %752 = vmatprep.subr.mxu0 0.0
    %753 = vmatpush1.xpose.msra.mxu0 %v711
    %754 = vmatprep.subr.mxu0 0.0
    %755 = vmatpush1.xpose.msra.mxu0 %v714
    %756 = vmatprep.subr.mxu0 0.0
    %757 = vmatpush1.xpose.msra.mxu0 %v717
    %758 = vmatprep.subr.mxu0 0.0
    %759 = vmatpush1.xpose.msra.mxu0 %v720
    %760 = vmatprep.subr.mxu0 0.0
    %761 = vmatpush1.xpose.msra.mxu0 %v723
    %762 = vmatprep.subr.mxu0 0.0
    %763 = vmatpush1.xpose.msra.mxu0 %v726
    %764 = vmatprep.subr.mxu0 0.0
    %765 = vmatpush1.xpose.msra.mxu0 %v729
    %766 = vmatprep.subr.mxu0 0.0
    %767 = vmatpush1.xpose.msra.mxu0 %v732
    %768 = vmatprep.subr.mxu0 0.0
    %769 = vmatpush1.xpose.msra.mxu0 %v735
    %770 = vmatprep.subr.mxu0 0.0
    %771 = vmatpush1.xpose.msra.mxu0 %v738
    %772 = vmatprep.subr.mxu0 0.0
    %773 = vmatpush1.xpose.msra.mxu0 0.0
    %774 = vmatprep.subr.mxu0 0.0
    %775 = vmatpush1.xpose.msra.mxu0 0.0
    %776 = vmatprep.subr.mxu0 0.0
    %777 = vmatpush1.xpose.msra.mxu0 0.0
    %778 = vmatprep.subr.mxu0 0.0
    %779 = vmatpush1.xpose.msra.mxu0 0.0
    %780 = vmatprep.subr.mxu0 0.0
    %781 = vmatpush1.xpose.msra.mxu0 0.0
    %782 = vmatprep.subr.mxu0 0.0
    %783 = vmatpush1.xpose.msra.mxu0 0.0
    %784 = vmatprep.subr.mxu0 0.0
    %785 = vmatpush1.xpose.msra.mxu0 0.0
    %786 = vmatprep.subr.mxu0 0.0
    %787 = vmatpush1.xpose.msra.mxu0 0.0
    %788 = vmatprep.subr.mxu0 0.0
    %789 = vmatpush1.xpose.msra.mxu0 0.0
    %790 = vmatprep.subr.mxu0 0.0
    %791 = vmatpush1.xpose.msra.mxu0 0.0
    %792 = vmatprep.subr.mxu0 0.0
    %793 = vmatpush1.xpose.msra.mxu0 0.0
    %794 = vmatprep.subr.mxu0 0.0
    %795 = vmatpush1.xpose.msra.mxu0 0.0
    %796 = vmatprep.subr.mxu0 0.0
    %797 = vmatpush1.xpose.msra.mxu0 0.0
    %798 = vmatprep.subr.mxu0 0.0
    %799 = vmatpush1.xpose.msra.mxu0 0.0
    %800 = vmatprep.subr.mxu0 0.0
    %801 = vmatpush1.xpose.msra.mxu0 0.0
    %802 = vmatprep.subr.mxu0 0.0
    %803 = vmatpush1.xpose.msra.mxu0 0.0
    %804 = vmatprep.mubr.f32.mxu0 0.0
    %805 = vmatmul.mubr.f32.gmra.mrb[0].mxu0 %v501
    %v806 = vpop.f32.mrb[0].mxu0
    %v807 = vadd.f32 %v182, %v806
    %v808 = vpop.f32.mrb[0].mxu0
    %809 = vmatprep.mubr.f32.mxu0 0.0
    %810 = vmatmul.mubr.f32.gmra.mrb[0].mxu0 %v504
    %v811 = vpop.f32.mrb[0].mxu0
    %v812 = vadd.f32 %v187, %v811
    %v813 = vpop.f32.mrb[0].mxu0
    %814 = vmatprep.mubr.f32.mxu0 0.0
    %815 = vmatmul.mubr.f32.gmra.mrb[0].mxu0 %v507
    %v816 = vpop.f32.mrb[0].mxu0
    %v817 = vadd.f32 %v192, %v816
    %v818 = vpop.f32.mrb[0].mxu0
    %819 = vmatprep.mubr.f32.mxu0 0.0
    %820 = vmatmul.mubr.f32.gmra.mrb[0].mxu0 %v510
    %v821 = vpop.f32.mrb[0].mxu0
    %v822 = vadd.f32 %v197, %v821
    %v823 = vpop.f32.mrb[0].mxu0
    %824 = vmatprep.mubr.f32.mxu0 0.0
    %825 = vmatmul.mubr.f32.gmra.mrb[0].mxu0 %v513
    %v826 = vpop.f32.mrb[0].mxu0
    %v827 = vadd.f32 %v202, %v826
    %v828 = vpop.f32.mrb[0].mxu0
    %829 = vmatprep.mubr.f32.mxu0 0.0
    %830 = vmatmul.mubr.f32.gmra.mrb[0].mxu0 %v516
    %v831 = vpop.f32.mrb[0].mxu0
    %v832 = vadd.f32 %v207, %v831
    %v833 = vpop.f32.mrb[0].mxu0
    %834 = vmatprep.mubr.f32.mxu0 0.0
    %835 = vmatmul.mubr.f32.gmra.mrb[0].mxu0 %v519
    %v836 = vpop.f32.mrb[0].mxu0
    %v837 = vadd.f32 %v212, %v836
    %v838 = vpop.f32.mrb[0].mxu0
    %839 = vmatprep.mubr.f32.mxu0 0.0
    %840 = vmatmul.mubr.f32.gmra.mrb[0].mxu0 %v522
    %v841 = vpop.f32.mrb[0].mxu0
    %v842 = vadd.f32 %v217, %v841
    %v843 = vpop.f32.mrb[0].mxu0
    %844 = vmatprep.mubr.f32.mxu0 0.0
    %845 = vmatmul.mubr.f32.gmra.mrb[0].mxu0 %v525
    %v846 = vpop.f32.mrb[0].mxu0
    %v847 = vadd.f32 %v222, %v846
    %v848 = vpop.f32.mrb[0].mxu0
    %849 = vmatprep.mubr.f32.mxu0 0.0
    %850 = vmatmul.mubr.f32.gmra.mrb[0].mxu0 %v528
    %v851 = vpop.f32.mrb[0].mxu0
    %v852 = vadd.f32 %v227, %v851
    %v853 = vpop.f32.mrb[0].mxu0
    %854 = vmatprep.mubr.f32.mxu0 0.0
    %855 = vmatmul.mubr.f32.gmra.mrb[0].mxu0 %v531
    %v856 = vpop.f32.mrb[0].mxu0
    %v857 = vadd.f32 %v232, %v856
    %v858 = vpop.f32.mrb[0].mxu0
    %859 = vmatprep.mubr.f32.mxu0 0.0
    %860 = vmatmul.mubr.f32.gmra.mrb[0].mxu0 %v534
    %v861 = vpop.f32.mrb[0].mxu0
    %v862 = vadd.f32 %v237, %v861
    %v863 = vpop.f32.mrb[0].mxu0
    %864 = vmatprep.mubr.f32.mxu0 0.0
    %865 = vmatmul.mubr.f32.gmra.mrb[0].mxu0 %v537
    %v866 = vpop.f32.mrb[0].mxu0
    %v867 = vadd.f32 %v242, %v866
    %v868 = vpop.f32.mrb[0].mxu0
    %869 = vmatprep.mubr.f32.mxu0 0.0
    %870 = vmatmul.mubr.f32.gmra.mrb[0].mxu0 %v540
    %v871 = vpop.f32.mrb[0].mxu0
    %v872 = vadd.f32 %v247, %v871
    %v873 = vpop.f32.mrb[0].mxu0
    %874 = vmatprep.mubr.f32.mxu0 0.0
    %875 = vmatmul.mubr.f32.gmra.mrb[0].mxu0 %v543
    %v876 = vpop.f32.mrb[0].mxu0
    %v877 = vadd.f32 %v252, %v876
    %v878 = vpop.f32.mrb[0].mxu0
    %879 = vmatprep.mubr.f32.mxu0 0.0
    %880 = vmatmul.mubr.f32.gmra.mrb[0].mxu0 %v546
    %v881 = vpop.f32.mrb[0].mxu0
    %v882 = vadd.f32 %v257, %v881
    %v883 = vpop.f32.mrb[0].mxu0
    %884 = vmatprep.mubr.f32.mxu0 0.0
    %885 = vmatmul.mubr.f32.gmra.mrb[0].mxu0 %v549
    %v886 = vpop.f32.mrb[0].mxu0
    %v887 = vadd.f32 %v262, %v886
    %v888 = vpop.f32.mrb[0].mxu0
    %889 = vmatprep.mubr.f32.mxu0 0.0
    %890 = vmatmul.mubr.f32.gmra.mrb[0].mxu0 %v552
    %v891 = vpop.f32.mrb[0].mxu0
    %v892 = vadd.f32 %v267, %v891
    %v893 = vpop.f32.mrb[0].mxu0
    %894 = vmatprep.mubr.f32.mxu0 0.0
    %895 = vmatmul.mubr.f32.gmra.mrb[0].mxu0 %v555
    %v896 = vpop.f32.mrb[0].mxu0
    %v897 = vadd.f32 %v272, %v896
    %v898 = vpop.f32.mrb[0].mxu0
    %899 = vmatprep.mubr.f32.mxu0 0.0
    %900 = vmatmul.mubr.f32.gmra.mrb[0].mxu0 %v558
    %v901 = vpop.f32.mrb[0].mxu0
    %v902 = vadd.f32 %v277, %v901
    %v903 = vpop.f32.mrb[0].mxu0
    %904 = vmatprep.mubr.f32.mxu0 0.0
    %905 = vmatmul.mubr.f32.gmra.mrb[0].mxu0 %v561
    %v906 = vpop.f32.mrb[0].mxu0
    %v907 = vadd.f32 %v282, %v906
    %v908 = vpop.f32.mrb[0].mxu0
    %909 = vmatprep.mubr.f32.mxu0 0.0
    %910 = vmatmul.mubr.f32.gmra.mrb[0].mxu0 %v564
    %v911 = vpop.f32.mrb[0].mxu0
    %v912 = vadd.f32 %v287, %v911
    %v913 = vpop.f32.mrb[0].mxu0
    %914 = vmatprep.mubr.f32.mxu0 0.0
    %915 = vmatmul.mubr.f32.gmra.mrb[0].mxu0 %v567
    %v916 = vpop.f32.mrb[0].mxu0
    %v917 = vadd.f32 %v292, %v916
    %v918 = vpop.f32.mrb[0].mxu0
    %919 = vmatprep.mubr.f32.mxu0 0.0
    %920 = vmatmul.mubr.f32.gmra.mrb[0].mxu0 %v570
    %v921 = vpop.f32.mrb[0].mxu0
    %v922 = vadd.f32 %v297, %v921
    %v923 = vpop.f32.mrb[0].mxu0
    %924 = vmatprep.mubr.f32.mxu0 0.0
    %925 = vmatmul.mubr.f32.gmra.mrb[0].mxu0 %v573
    %v926 = vpop.f32.mrb[0].mxu0
    %v927 = vadd.f32 %v302, %v926
    %v928 = vpop.f32.mrb[0].mxu0
    %929 = vmatprep.mubr.f32.mxu0 0.0
    %930 = vmatmul.mubr.f32.gmra.mrb[0].mxu0 %v576
    %v931 = vpop.f32.mrb[0].mxu0
    %v932 = vadd.f32 %v307, %v931
    %v933 = vpop.f32.mrb[0].mxu0
    %934 = vmatprep.mubr.f32.mxu0 0.0
    %935 = vmatmul.mubr.f32.gmra.mrb[0].mxu0 %v579
    %v936 = vpop.f32.mrb[0].mxu0
    %v937 = vadd.f32 %v312, %v936
    %v938 = vpop.f32.mrb[0].mxu0
    %939 = vmatprep.mubr.f32.mxu0 0.0
    %940 = vmatmul.mubr.f32.gmra.mrb[0].mxu0 %v582
    %v941 = vpop.f32.mrb[0].mxu0
    %v942 = vadd.f32 %v317, %v941
    %v943 = vpop.f32.mrb[0].mxu0
    %944 = vmatprep.mubr.f32.mxu0 0.0
    %945 = vmatmul.mubr.f32.gmra.mrb[0].mxu0 %v585
    %v946 = vpop.f32.mrb[0].mxu0
    %v947 = vadd.f32 %v322, %v946
    %v948 = vpop.f32.mrb[0].mxu0
    %949 = vmatprep.mubr.f32.mxu0 0.0
    %950 = vmatmul.mubr.f32.gmra.mrb[0].mxu0 %v588
    %v951 = vpop.f32.mrb[0].mxu0
    %v952 = vadd.f32 %v327, %v951
    %v953 = vpop.f32.mrb[0].mxu0
    %954 = vmatprep.mubr.f32.mxu0 0.0
    %955 = vmatmul.mubr.f32.gmra.mrb[0].mxu0 %v591
    %v956 = vpop.f32.mrb[0].mxu0
    %v957 = vadd.f32 %v332, %v956
    %v958 = vpop.f32.mrb[0].mxu0
    %959 = vmatprep.mubr.f32.mxu0 0.0
    %960 = vmatmul.mubr.f32.gmra.mrb[0].mxu0 %v594
    %v961 = vpop.f32.mrb[0].mxu0
    %v962 = vadd.f32 %v337, %v961
    %v963 = vpop.f32.mrb[0].mxu0
    %964 = vmatprep.mubr.f32.mxu0 0.0
    %965 = vmatmul.mubr.f32.gmra.mrb[0].mxu0 %v597
    %v966 = vpop.f32.mrb[0].mxu0
    %v967 = vadd.f32 %v342, %v966
    %v968 = vpop.f32.mrb[0].mxu0
    %969 = vmatprep.mubr.f32.mxu0 0.0
    %970 = vmatmul.mubr.f32.gmra.mrb[0].mxu0 %v600
    %v971 = vpop.f32.mrb[0].mxu0
    %v972 = vadd.f32 %v347, %v971
    %v973 = vpop.f32.mrb[0].mxu0
    %974 = vmatprep.mubr.f32.mxu0 0.0
    %975 = vmatmul.mubr.f32.gmra.mrb[0].mxu0 %v603
    %v976 = vpop.f32.mrb[0].mxu0
    %v977 = vadd.f32 %v352, %v976
    %v978 = vpop.f32.mrb[0].mxu0
    %979 = vmatprep.mubr.f32.mxu0 0.0
    %980 = vmatmul.mubr.f32.gmra.mrb[0].mxu0 %v606
    %v981 = vpop.f32.mrb[0].mxu0
    %v982 = vadd.f32 %v357, %v981
    %v983 = vpop.f32.mrb[0].mxu0
    %984 = vmatprep.mubr.f32.mxu0 0.0
    %985 = vmatmul.mubr.f32.gmra.mrb[0].mxu0 %v609
    %v986 = vpop.f32.mrb[0].mxu0
    %v987 = vadd.f32 %v362, %v986
    %v988 = vpop.f32.mrb[0].mxu0
    %989 = vmatprep.mubr.f32.mxu0 0.0
    %990 = vmatmul.mubr.f32.gmra.mrb[0].mxu0 %v612
    %v991 = vpop.f32.mrb[0].mxu0
    %v992 = vadd.f32 %v367, %v991
    %v993 = vpop.f32.mrb[0].mxu0
    %994 = vmatprep.mubr.f32.mxu0 0.0
    %995 = vmatmul.mubr.f32.gmra.mrb[0].mxu0 %v615
    %v996 = vpop.f32.mrb[0].mxu0
    %v997 = vadd.f32 %v372, %v996
    %v998 = vpop.f32.mrb[0].mxu0
    %999 = vmatprep.mubr.f32.mxu0 0.0
    %1000 = vmatmul.mubr.f32.gmra.mrb[0].mxu0 %v618
    %v1001 = vpop.f32.mrb[0].mxu0
    %v1002 = vadd.f32 %v377, %v1001
    %v1003 = vpop.f32.mrb[0].mxu0
    %1004 = vmatprep.mubr.f32.mxu0 0.0
    %1005 = vmatmul.mubr.f32.gmra.mrb[0].mxu0 %v621
    %v1006 = vpop.f32.mrb[0].mxu0
    %v1007 = vadd.f32 %v382, %v1006
    %v1008 = vpop.f32.mrb[0].mxu0
    %1009 = vmatprep.mubr.f32.mxu0 0.0
    %1010 = vmatmul.mubr.f32.gmra.mrb[0].mxu0 %v624
    %v1011 = vpop.f32.mrb[0].mxu0
    %v1012 = vadd.f32 %v387, %v1011
    %v1013 = vpop.f32.mrb[0].mxu0
    %1014 = vmatprep.mubr.f32.mxu0 0.0
    %1015 = vmatmul.mubr.f32.gmra.mrb[0].mxu0 %v627
    %v1016 = vpop.f32.mrb[0].mxu0
    %v1017 = vadd.f32 %v392, %v1016
    %v1018 = vpop.f32.mrb[0].mxu0
    %1019 = vmatprep.mubr.f32.mxu0 0.0
    %1020 = vmatmul.mubr.f32.gmra.mrb[0].mxu0 %v630
    %v1021 = vpop.f32.mrb[0].mxu0
    %v1022 = vadd.f32 %v397, %v1021
    %v1023 = vpop.f32.mrb[0].mxu0
    %1024 = vmatprep.mubr.f32.mxu0 0.0
    %1025 = vmatmul.mubr.f32.gmra.mrb[0].mxu0 %v633
    %v1026 = vpop.f32.mrb[0].mxu0
    %v1027 = vadd.f32 %v402, %v1026
    %v1028 = vpop.f32.mrb[0].mxu0
    %1029 = vmatprep.mubr.f32.mxu0 0.0
    %1030 = vmatmul.mubr.f32.gmra.mrb[0].mxu0 %v636
    %v1031 = vpop.f32.mrb[0].mxu0
    %v1032 = vadd.f32 %v407, %v1031
    %v1033 = vpop.f32.mrb[0].mxu0
    %1034 = vmatprep.mubr.f32.mxu0 0.0
    %1035 = vmatmul.mubr.f32.gmra.mrb[0].mxu0 %v639
    %v1036 = vpop.f32.mrb[0].mxu0
    %v1037 = vadd.f32 %v412, %v1036
    %v1038 = vpop.f32.mrb[0].mxu0
    %1039 = vmatprep.mubr.f32.mxu0 0.0
    %1040 = vmatmul.mubr.f32.gmra.mrb[0].mxu0 %v642
    %v1041 = vpop.f32.mrb[0].mxu0
    %v1042 = vadd.f32 %v417, %v1041
    %v1043 = vpop.f32.mrb[0].mxu0
    %1044 = vmatprep.mubr.f32.mxu0 0.0
    %1045 = vmatmul.mubr.f32.gmra.mrb[0].mxu0 %v645
    %v1046 = vpop.f32.mrb[0].mxu0
    %v1047 = vadd.f32 %v422, %v1046
    %v1048 = vpop.f32.mrb[0].mxu0
    %1049 = vmatprep.mubr.f32.mxu0 0.0
    %1050 = vmatmul.mubr.f32.gmra.mrb[0].mxu0 %v648
    %v1051 = vpop.f32.mrb[0].mxu0
    %v1052 = vadd.f32 %v427, %v1051
    %v1053 = vpop.f32.mrb[0].mxu0
    %1054 = vmatprep.mubr.f32.mxu0 0.0
    %1055 = vmatmul.mubr.f32.gmra.mrb[0].mxu0 %v651
    %v1056 = vpop.f32.mrb[0].mxu0
    %v1057 = vadd.f32 %v432, %v1056
    %v1058 = vpop.f32.mrb[0].mxu0
    %1059 = vmatprep.mubr.f32.mxu0 0.0
    %1060 = vmatmul.mubr.f32.gmra.mrb[0].mxu0 %v654
    %v1061 = vpop.f32.mrb[0].mxu0
    %v1062 = vadd.f32 %v437, %v1061
    %v1063 = vpop.f32.mrb[0].mxu0
    %1064 = vmatprep.mubr.f32.mxu0 0.0
    %1065 = vmatmul.mubr.f32.gmra.mrb[0].mxu0 %v657
    %v1066 = vpop.f32.mrb[0].mxu0
    %v1067 = vadd.f32 %v442, %v1066
    %v1068 = vpop.f32.mrb[0].mxu0
    %1069 = vmatprep.mubr.f32.mxu0 0.0
    %1070 = vmatmul.mubr.f32.gmra.mrb[0].mxu0 %v660
    %v1071 = vpop.f32.mrb[0].mxu0
    %v1072 = vadd.f32 %v447, %v1071
    %v1073 = vpop.f32.mrb[0].mxu0
    %1074 = vmatprep.mubr.f32.mxu0 0.0
    %1075 = vmatmul.mubr.f32.gmra.mrb[0].mxu0 %v663
    %v1076 = vpop.f32.mrb[0].mxu0
    %v1077 = vadd.f32 %v452, %v1076
    %v1078 = vpop.f32.mrb[0].mxu0
    %1079 = vmatprep.mubr.f32.mxu0 0.0
    %1080 = vmatmul.mubr.f32.gmra.mrb[0].mxu0 %v666
    %v1081 = vpop.f32.mrb[0].mxu0
    %v1082 = vadd.f32 %v457, %v1081
    %v1083 = vpop.f32.mrb[0].mxu0
    %1084 = vmatprep.mubr.f32.mxu0 0.0
    %1085 = vmatmul.mubr.f32.gmra.mrb[0].mxu0 %v669
    %v1086 = vpop.f32.mrb[0].mxu0
    %v1087 = vadd.f32 %v462, %v1086
    %v1088 = vpop.f32.mrb[0].mxu0
    %1089 = vmatprep.mubr.f32.mxu0 0.0
    %1090 = vmatmul.mubr.f32.gmra.mrb[0].mxu0 %v672
    %v1091 = vpop.f32.mrb[0].mxu0
    %v1092 = vadd.f32 %v467, %v1091
    %v1093 = vpop.f32.mrb[0].mxu0
    %1094 = vmatprep.mubr.f32.mxu0 0.0
    %1095 = vmatmul.mubr.f32.gmra.mrb[0].mxu0 %v675
    %v1096 = vpop.f32.mrb[0].mxu0
    %v1097 = vadd.f32 %v472, %v1096
    %v1098 = vpop.f32.mrb[0].mxu0
    %1099 = vmatprep.mubr.f32.mxu0 0.0
    %1100 = vmatmul.mubr.f32.gmra.mrb[0].mxu0 %v678
    %v1101 = vpop.f32.mrb[0].mxu0
    %v1102 = vadd.f32 %v477, %v1101
    %v1103 = vpop.f32.mrb[0].mxu0
    %1104 = vmatprep.mubr.f32.mxu0 0.0
    %1105 = vmatmul.mubr.f32.gmra.mrb[0].mxu0 %v681
    %v1106 = vpop.f32.mrb[0].mxu0
    %v1107 = vadd.f32 %v482, %v1106
    %v1108 = vpop.f32.mrb[0].mxu0
    %1109 = vmatprep.mubr.f32.mxu0 0.0
    %1110 = vmatmul.mubr.f32.gmra.mrb[0].mxu0 %v684
    %v1111 = vpop.f32.mrb[0].mxu0
    %v1112 = vadd.f32 %v487, %v1111
    %v1113 = vpop.f32.mrb[0].mxu0
    %1114 = vmatprep.mubr.f32.mxu0 0.0
    %1115 = vmatmul.mubr.f32.gmra.mrb[0].mxu0 %v687
    %v1116 = vpop.f32.mrb[0].mxu0
    %v1117 = vadd.f32 %v492, %v1116
    %v1118 = vpop.f32.mrb[0].mxu0
    %1119 = vmatprep.mubr.f32.mxu0 0.0
    %1120 = vmatmul.mubr.f32.gmra.mrb[0].mxu0 %v690
    %v1121 = vpop.f32.mrb[0].mxu0
    %v1122 = vadd.f32 %v497, %v1121
    %v1123 = vpop.f32.mrb[0].mxu0
    %1124 = vdwg.mxu0
    %v1125 = vmul.f32 %v807, 0.01
    %v1126 = vmul.f32 %v812, 0.01
    %v1127 = vmul.f32 %v817, 0.01
    %v1128 = vmul.f32 %v822, 0.01
    %v1129 = vmul.f32 %v827, 0.01
    %v1130 = vmul.f32 %v832, 0.01
    %v1131 = vmul.f32 %v837, 0.01
    %v1132 = vmul.f32 %v842, 0.01
    %v1133 = vmul.f32 %v847, 0.01
    %v1134 = vmul.f32 %v852, 0.01
    %v1135 = vmul.f32 %v857, 0.01
    %v1136 = vmul.f32 %v862, 0.01
    %v1137 = vmul.f32 %v867, 0.01
    %v1138 = vmul.f32 %v872, 0.01
    %v1139 = vmul.f32 %v877, 0.01
    %v1140 = vmul.f32 %v882, 0.01
    %v1141 = vmul.f32 %v887, 0.01
    %v1142 = vmul.f32 %v892, 0.01
    %v1143 = vmul.f32 %v897, 0.01
    %v1144 = vmul.f32 %v902, 0.01
    %v1145 = vmul.f32 %v907, 0.01
    %v1146 = vmul.f32 %v912, 0.01
    %v1147 = vmul.f32 %v917, 0.01
    %v1148 = vmul.f32 %v922, 0.01
    %v1149 = vmul.f32 %v927, 0.01
    %v1150 = vmul.f32 %v932, 0.01
    %v1151 = vmul.f32 %v937, 0.01
    %v1152 = vmul.f32 %v942, 0.01
    %v1153 = vmul.f32 %v947, 0.01
    %v1154 = vmul.f32 %v952, 0.01
    %v1155 = vmul.f32 %v957, 0.01
    %v1156 = vmul.f32 %v962, 0.01
    %v1157 = vmul.f32 %v967, 0.01
    %v1158 = vmul.f32 %v972, 0.01
    %v1159 = vmul.f32 %v977, 0.01
    %v1160 = vmul.f32 %v982, 0.01
    %v1161 = vmul.f32 %v987, 0.01
    %v1162 = vmul.f32 %v992, 0.01
    %v1163 = vmul.f32 %v997, 0.01
    %v1164 = vmul.f32 %v1002, 0.01
    %v1165 = vmul.f32 %v1007, 0.01
    %v1166 = vmul.f32 %v1012, 0.01
    %v1167 = vmul.f32 %v1017, 0.01
    %v1168 = vmul.f32 %v1022, 0.01
    %v1169 = vmul.f32 %v1027, 0.01
    %v1170 = vmul.f32 %v1032, 0.01
    %v1171 = vmul.f32 %v1037, 0.01
    %v1172 = vmul.f32 %v1042, 0.01
    %v1173 = vmul.f32 %v1047, 0.01
    %v1174 = vmul.f32 %v1052, 0.01
    %v1175 = vmul.f32 %v1057, 0.01
    %v1176 = vmul.f32 %v1062, 0.01
    %v1177 = vmul.f32 %v1067, 0.01
    %v1178 = vmul.f32 %v1072, 0.01
    %v1179 = vmul.f32 %v1077, 0.01
    %v1180 = vmul.f32 %v1082, 0.01
    %v1181 = vmul.f32 %v1087, 0.01
    %v1182 = vmul.f32 %v1092, 0.01
    %v1183 = vmul.f32 %v1097, 0.01
    %v1184 = vmul.f32 %v1102, 0.01
    %v1185 = vmul.f32 %v1107, 0.01
    %v1186 = vmul.f32 %v1112, 0.01
    %v1187 = vmul.f32 %v1117, 0.01
    %v1188 = vmul.f32 %v1122, 0.01
    %v1189 = vmax.f32 %v807, %v1125
    %v1190 = vmax.f32 %v812, %v1126
    %v1191 = vmax.f32 %v817, %v1127
    %v1192 = vmax.f32 %v822, %v1128
    %v1193 = vmax.f32 %v827, %v1129
    %v1194 = vmax.f32 %v832, %v1130
    %v1195 = vmax.f32 %v837, %v1131
    %v1196 = vmax.f32 %v842, %v1132
    %v1197 = vmax.f32 %v847, %v1133
    %v1198 = vmax.f32 %v852, %v1134
    %v1199 = vmax.f32 %v857, %v1135
    %v1200 = vmax.f32 %v862, %v1136
    %v1201 = vmax.f32 %v867, %v1137
    %v1202 = vmax.f32 %v872, %v1138
    %v1203 = vmax.f32 %v877, %v1139
    %v1204 = vmax.f32 %v882, %v1140
    %v1205 = vmax.f32 %v887, %v1141
    %v1206 = vmax.f32 %v892, %v1142
    %v1207 = vmax.f32 %v897, %v1143
    %v1208 = vmax.f32 %v902, %v1144
    %v1209 = vmax.f32 %v907, %v1145
    %v1210 = vmax.f32 %v912, %v1146
    %v1211 = vmax.f32 %v917, %v1147
    %v1212 = vmax.f32 %v922, %v1148
    %v1213 = vmax.f32 %v927, %v1149
    %v1214 = vmax.f32 %v932, %v1150
    %v1215 = vmax.f32 %v937, %v1151
    %v1216 = vmax.f32 %v942, %v1152
    %v1217 = vmax.f32 %v947, %v1153
    %v1218 = vmax.f32 %v952, %v1154
    %v1219 = vmax.f32 %v957, %v1155
    %v1220 = vmax.f32 %v962, %v1156
    %v1221 = vmax.f32 %v967, %v1157
    %v1222 = vmax.f32 %v972, %v1158
    %v1223 = vmax.f32 %v977, %v1159
    %v1224 = vmax.f32 %v982, %v1160
    %v1225 = vmax.f32 %v987, %v1161
    %v1226 = vmax.f32 %v992, %v1162
    %v1227 = vmax.f32 %v997, %v1163
    %v1228 = vmax.f32 %v1002, %v1164
    %v1229 = vmax.f32 %v1007, %v1165
    %v1230 = vmax.f32 %v1012, %v1166
    %v1231 = vmax.f32 %v1017, %v1167
    %v1232 = vmax.f32 %v1022, %v1168
    %v1233 = vmax.f32 %v1027, %v1169
    %v1234 = vmax.f32 %v1032, %v1170
    %v1235 = vmax.f32 %v1037, %v1171
    %v1236 = vmax.f32 %v1042, %v1172
    %v1237 = vmax.f32 %v1047, %v1173
    %v1238 = vmax.f32 %v1052, %v1174
    %v1239 = vmax.f32 %v1057, %v1175
    %v1240 = vmax.f32 %v1062, %v1176
    %v1241 = vmax.f32 %v1067, %v1177
    %v1242 = vmax.f32 %v1072, %v1178
    %v1243 = vmax.f32 %v1077, %v1179
    %v1244 = vmax.f32 %v1082, %v1180
    %v1245 = vmax.f32 %v1087, %v1181
    %v1246 = vmax.f32 %v1092, %v1182
    %v1247 = vmax.f32 %v1097, %v1183
    %v1248 = vmax.f32 %v1102, %v1184
    %v1249 = vmax.f32 %v1107, %v1185
    %v1250 = vmax.f32 %v1112, %v1186
    %v1251 = vmax.f32 %v1117, %v1187
    %v1252 = vmax.f32 %v1122, %v1188
    %v1253 = vld [vmem:[%s3] sm:$0xff]
    %v1254 = vld [vmem:[%s3 + $0x8] sm:$0xff]
    %v1255 = vld [vmem:[%s3 + $0x10] sm:$0xff]
    %v1256 = vld [vmem:[%s3 + $0x18] sm:$0xff]
    %v1257 = vld [vmem:[%s3 + $0x20] sm:$0xff]
    %v1258 = vld [vmem:[%s3 + $0x28] sm:$0xff]
    %v1259 = vld [vmem:[%s3 + $0x30] sm:$0xff]
    %v1260 = vld [vmem:[%s3 + $0x38] sm:$0xff]
    %v1261 = vld [vmem:[%s3 + $0x40] sm:$0xff]
    %v1262 = vld [vmem:[%s3 + $0x48] sm:$0xff]
    %v1263 = vld [vmem:[%s3 + $0x50] sm:$0xff]
    %v1264 = vld [vmem:[%s3 + $0x58] sm:$0xff]
    %v1265 = vld [vmem:[%s3 + $0x60] sm:$0xff]
    %v1266 = vld [vmem:[%s3 + $0x68] sm:$0xff]
    %v1267 = vld [vmem:[%s3 + $0x70] sm:$0xff]
    %v1268 = vld [vmem:[%s3 + $0x78] sm:$0xff]
    %v1269 = vld [vmem:[%s3 + $0x80] sm:$0xff]
    %v1270 = vld [vmem:[%s3 + $0x88] sm:$0xff]
    %v1271 = vld [vmem:[%s3 + $0x90] sm:$0xff]
    %v1272 = vld [vmem:[%s3 + $0x98] sm:$0xff]
    %v1273 = vld [vmem:[%s3 + $0xa0] sm:$0xff]
    %v1274 = vld [vmem:[%s3 + $0xa8] sm:$0xff]
    %v1275 = vld [vmem:[%s3 + $0xb0] sm:$0xff]
    %v1276 = vld [vmem:[%s3 + $0xb8] sm:$0xff]
    %v1277 = vld [vmem:[%s3 + $0xc0] sm:$0xff]
    %v1278 = vld [vmem:[%s3 + $0xc8] sm:$0xff]
    %v1279 = vld [vmem:[%s3 + $0xd0] sm:$0xff]
    %v1280 = vld [vmem:[%s3 + $0xd8] sm:$0xff]
    %v1281 = vld [vmem:[%s3 + $0xe0] sm:$0xff]
    %v1282 = vld [vmem:[%s3 + $0xe8] sm:$0xff]
    %v1283 = vld [vmem:[%s3 + $0xf0] sm:$0xff]
    %v1284 = vld [vmem:[%s3 + $0xf8] sm:$0xff]
    %v1285 = vld [vmem:[%s3 + $0x100] sm:$0xff]
    %v1286 = vld [vmem:[%s3 + $0x108] sm:$0xff]
    %v1287 = vld [vmem:[%s3 + $0x110] sm:$0xff]
    %v1288 = vld [vmem:[%s3 + $0x118] sm:$0xff]
    %v1289 = vld [vmem:[%s3 + $0x120] sm:$0xff]
    %v1290 = vld [vmem:[%s3 + $0x128] sm:$0xff]
    %v1291 = vld [vmem:[%s3 + $0x130] sm:$0xff]
    %v1292 = vld [vmem:[%s3 + $0x138] sm:$0xff]
    %v1293 = vld [vmem:[%s3 + $0x140] sm:$0xff]
    %v1294 = vld [vmem:[%s3 + $0x148] sm:$0xff]
    %v1295 = vld [vmem:[%s3 + $0x150] sm:$0xff]
    %v1296 = vld [vmem:[%s3 + $0x158] sm:$0xff]
    %v1297 = vld [vmem:[%s3 + $0x160] sm:$0xff]
    %v1298 = vld [vmem:[%s3 + $0x168] sm:$0xff]
    %v1299 = vld [vmem:[%s3 + $0x170] sm:$0xff]
    %v1300 = vld [vmem:[%s3 + $0x178] sm:$0xff]
    %v1301 = vld [vmem:[%s3 + $0x180] sm:$0xff]
    %v1302 = vld [vmem:[%s3 + $0x188] sm:$0xff]
    %v1303 = vld [vmem:[%s3 + $0x190] sm:$0xff]
    %v1304 = vld [vmem:[%s3 + $0x198] sm:$0xff]
    %v1305 = vld [vmem:[%s3 + $0x1a0] sm:$0xff]
    %v1306 = vld [vmem:[%s3 + $0x1a8] sm:$0xff]
    %v1307 = vld [vmem:[%s3 + $0x1b0] sm:$0xff]
    %v1308 = vld [vmem:[%s3 + $0x1b8] sm:$0xff]
    %v1309 = vld [vmem:[%s3 + $0x1c0] sm:$0xff]
    %v1310 = vld [vmem:[%s3 + $0x1c8] sm:$0xff]
    %v1311 = vld [vmem:[%s3 + $0x1d0] sm:$0xff]
    %v1312 = vld [vmem:[%s3 + $0x1d8] sm:$0xff]
    %v1313 = vld [vmem:[%s3 + $0x1e0] sm:$0xff]
    %v1314 = vld [vmem:[%s3 + $0x1e8] sm:$0xff]
    %v1315 = vld [vmem:[%s3 + $0x1f0] sm:$0xff]
    %v1316 = vld [vmem:[%s3 + $0x1f8] sm:$0xff]
    %v1317 = vld [vmem:[%s4] sm:$0xff]
    %v1318 = vld [vmem:[%s4 + $0x8] sm:$0xff]
    %v1319 = vld [vmem:[%s4 + $0x10] sm:$0xff]
    %v1320 = vld [vmem:[%s4 + $0x18] sm:$0xff]
    %v1321 = vld [vmem:[%s4 + $0x20] sm:$0xff]
    %v1322 = vld [vmem:[%s4 + $0x28] sm:$0xff]
    %v1323 = vld [vmem:[%s4 + $0x30] sm:$0xff]
    %v1324 = vld [vmem:[%s4 + $0x38] sm:$0xff]
    %v1325 = vld [vmem:[%s4 + $0x40] sm:$0xff]
    %v1326 = vld [vmem:[%s4 + $0x48] sm:$0xff]
    %v1327 = vld [vmem:[%s4 + $0x50] sm:$0xff]
    %v1328 = vld [vmem:[%s4 + $0x58] sm:$0xff]
    %v1329 = vld [vmem:[%s4 + $0x60] sm:$0xff]
    %v1330 = vld [vmem:[%s4 + $0x68] sm:$0xff]
    %v1331 = vld [vmem:[%s4 + $0x70] sm:$0xff]
    %v1332 = vld [vmem:[%s4 + $0x78] sm:$0xff]
    %1334 = vset.pattern.permute.xlu0 0
    %1335 = vperm.xlu0 %1334, %v1317
    %v1336 = vpop.permute.xlu0 %1335
    %1339 = vset.pattern.permute.xlu0 0
    %1340 = vperm.xlu0 %1339, %v1318
    %v1341 = vpop.permute.xlu0 %1340
    %1344 = vset.pattern.permute.xlu0 0
    %1345 = vperm.xlu0 %1344, %v1319
    %v1346 = vpop.permute.xlu0 %1345
    %1349 = vset.pattern.permute.xlu0 0
    %1350 = vperm.xlu0 %1349, %v1320
    %v1351 = vpop.permute.xlu0 %1350
    %1354 = vset.pattern.permute.xlu0 0
    %1355 = vperm.xlu0 %1354, %v1321
    %v1356 = vpop.permute.xlu0 %1355
    %1359 = vset.pattern.permute.xlu0 0
    %1360 = vperm.xlu0 %1359, %v1322
    %v1361 = vpop.permute.xlu0 %1360
    %1364 = vset.pattern.permute.xlu0 0
    %1365 = vperm.xlu0 %1364, %v1323
    %v1366 = vpop.permute.xlu0 %1365
    %1369 = vset.pattern.permute.xlu0 0
    %1370 = vperm.xlu0 %1369, %v1324
    %v1371 = vpop.permute.xlu0 %1370
    %1374 = vset.pattern.permute.xlu0 0
    %1375 = vperm.xlu0 %1374, %v1325
    %v1376 = vpop.permute.xlu0 %1375
    %1379 = vset.pattern.permute.xlu0 0
    %1380 = vperm.xlu0 %1379, %v1326
    %v1381 = vpop.permute.xlu0 %1380
    %1384 = vset.pattern.permute.xlu0 0
    %1385 = vperm.xlu0 %1384, %v1327
    %v1386 = vpop.permute.xlu0 %1385
    %1389 = vset.pattern.permute.xlu0 0
    %1390 = vperm.xlu0 %1389, %v1328
    %v1391 = vpop.permute.xlu0 %1390
    %1394 = vset.pattern.permute.xlu0 0
    %1395 = vperm.xlu0 %1394, %v1329
    %v1396 = vpop.permute.xlu0 %1395
    %1399 = vset.pattern.permute.xlu0 0
    %1400 = vperm.xlu0 %1399, %v1330
    %v1401 = vpop.permute.xlu0 %1400
    %1404 = vset.pattern.permute.xlu0 0
    %1405 = vperm.xlu0 %1404, %v1331
    %v1406 = vpop.permute.xlu0 %1405
    %1409 = vset.pattern.permute.xlu0 0
    %1410 = vperm.xlu0 %1409, %v1332
    %v1411 = vpop.permute.xlu0 %1410
    %1413 = vmatprep.subr.mxu0 0.0
    %1414 = vmatpush1.msra.mxu0 %v1189
    %1415 = vmatprep.subr.mxu0 0.0
    %1416 = vmatpush1.msra.mxu0 %v1190
    %1417 = vmatprep.subr.mxu0 0.0
    %1418 = vmatpush1.msra.mxu0 %v1191
    %1419 = vmatprep.subr.mxu0 0.0
    %1420 = vmatpush1.msra.mxu0 %v1192
    %1421 = vmatprep.subr.mxu0 0.0
    %1422 = vmatpush1.msra.mxu0 %v1193
    %1423 = vmatprep.subr.mxu0 0.0
    %1424 = vmatpush1.msra.mxu0 %v1194
    %1425 = vmatprep.subr.mxu0 0.0
    %1426 = vmatpush1.msra.mxu0 %v1195
    %1427 = vmatprep.subr.mxu0 0.0
    %1428 = vmatpush1.msra.mxu0 %v1196
    %1429 = vmatprep.subr.mxu0 0.0
    %1430 = vmatpush1.msra.mxu0 %v1197
    %1431 = vmatprep.subr.mxu0 0.0
    %1432 = vmatpush1.msra.mxu0 %v1198
    %1433 = vmatprep.subr.mxu0 0.0
    %1434 = vmatpush1.msra.mxu0 %v1199
    %1435 = vmatprep.subr.mxu0 0.0
    %1436 = vmatpush1.msra.mxu0 %v1200
    %1437 = vmatprep.subr.mxu0 0.0
    %1438 = vmatpush1.msra.mxu0 %v1201
    %1439 = vmatprep.subr.mxu0 0.0
    %1440 = vmatpush1.msra.mxu0 %v1202
    %1441 = vmatprep.subr.mxu0 0.0
    %1442 = vmatpush1.msra.mxu0 %v1203
    %1443 = vmatprep.subr.mxu0 0.0
    %1444 = vmatpush1.msra.mxu0 %v1204
    %1445 = vmatprep.subr.mxu0 0.0
    %1446 = vmatpush1.msra.mxu0 %v1205
    %1447 = vmatprep.subr.mxu0 0.0
    %1448 = vmatpush1.msra.mxu0 %v1206
    %1449 = vmatprep.subr.mxu0 0.0
    %1450 = vmatpush1.msra.mxu0 %v1207
    %1451 = vmatprep.subr.mxu0 0.0
    %1452 = vmatpush1.msra.mxu0 %v1208
    %1453 = vmatprep.subr.mxu0 0.0
    %1454 = vmatpush1.msra.mxu0 %v1209
    %1455 = vmatprep.subr.mxu0 0.0
    %1456 = vmatpush1.msra.mxu0 %v1210
    %1457 = vmatprep.subr.mxu0 0.0
    %1458 = vmatpush1.msra.mxu0 %v1211
    %1459 = vmatprep.subr.mxu0 0.0
    %1460 = vmatpush1.msra.mxu0 %v1212
    %1461 = vmatprep.subr.mxu0 0.0
    %1462 = vmatpush1.msra.mxu0 %v1213
    %1463 = vmatprep.subr.mxu0 0.0
    %1464 = vmatpush1.msra.mxu0 %v1214
    %1465 = vmatprep.subr.mxu0 0.0
    %1466 = vmatpush1.msra.mxu0 %v1215
    %1467 = vmatprep.subr.mxu0 0.0
    %1468 = vmatpush1.msra.mxu0 %v1216
    %1469 = vmatprep.subr.mxu0 0.0
    %1470 = vmatpush1.msra.mxu0 %v1217
    %1471 = vmatprep.subr.mxu0 0.0
    %1472 = vmatpush1.msra.mxu0 %v1218
    %1473 = vmatprep.subr.mxu0 0.0
    %1474 = vmatpush1.msra.mxu0 %v1219
    %1475 = vmatprep.subr.mxu0 0.0
    %1476 = vmatpush1.msra.mxu0 %v1220
    %1477 = vmatprep.mubr.f32.mxu0 %v1254
    %1478 = vmatmul.mubr.f32.gmra.mrb[0].mxu0 %v1253
    %v1479 = vpop.f32.mrb[0].mxu0
    %v1480 = vadd.f32 %v1336, %v1479
    %v1481 = vpop.f32.mrb[0].mxu0
    %1482 = vmatprep.mubr.f32.mxu0 %v1258
    %1483 = vmatmul.mubr.f32.gmra.mrb[0].mxu0 %v1257
    %v1484 = vpop.f32.mrb[0].mxu0
    %v1485 = vadd.f32 %v1341, %v1484
    %v1486 = vpop.f32.mrb[0].mxu0
    %1487 = vmatprep.mubr.f32.mxu0 %v1262
    %1488 = vmatmul.mubr.f32.gmra.mrb[0].mxu0 %v1261
    %v1489 = vpop.f32.mrb[0].mxu0
    %v1490 = vadd.f32 %v1346, %v1489
    %v1491 = vpop.f32.mrb[0].mxu0
    %1492 = vmatprep.mubr.f32.mxu0 %v1266
    %1493 = vmatmul.mubr.f32.gmra.mrb[0].mxu0 %v1265
    %v1494 = vpop.f32.mrb[0].mxu0
    %v1495 = vadd.f32 %v1351, %v1494
    %v1496 = vpop.f32.mrb[0].mxu0
    %1497 = vmatprep.mubr.f32.mxu0 %v1270
    %1498 = vmatmul.mubr.f32.gmra.mrb[0].mxu0 %v1269
    %v1499 = vpop.f32.mrb[0].mxu0
    %v1500 = vadd.f32 %v1356, %v1499
    %v1501 = vpop.f32.mrb[0].mxu0
    %1502 = vmatprep.mubr.f32.mxu0 %v1274
    %1503 = vmatmul.mubr.f32.gmra.mrb[0].mxu0 %v1273
    %v1504 = vpop.f32.mrb[0].mxu0
    %v1505 = vadd.f32 %v1361, %v1504
    %v1506 = vpop.f32.mrb[0].mxu0
    %1507 = vmatprep.mubr.f32.mxu0 %v1278
    %1508 = vmatmul.mubr.f32.gmra.mrb[0].mxu0 %v1277
    %v1509 = vpop.f32.mrb[0].mxu0
    %v1510 = vadd.f32 %v1366, %v1509
    %v1511 = vpop.f32.mrb[0].mxu0
    %1512 = vmatprep.mubr.f32.mxu0 %v1282
    %1513 = vmatmul.mubr.f32.gmra.mrb[0].mxu0 %v1281
    %v1514 = vpop.f32.mrb[0].mxu0
    %v1515 = vadd.f32 %v1371, %v1514
    %v1516 = vpop.f32.mrb[0].mxu0
    %1517 = vmatprep.mubr.f32.mxu0 %v1286
    %1518 = vmatmul.mubr.f32.gmra.mrb[0].mxu0 %v1285
    %v1519 = vpop.f32.mrb[0].mxu0
    %v1520 = vadd.f32 %v1376, %v1519
    %v1521 = vpop.f32.mrb[0].mxu0
    %1522 = vmatprep.mubr.f32.mxu0 %v1290
    %1523 = vmatmul.mubr.f32.gmra.mrb[0].mxu0 %v1289
    %v1524 = vpop.f32.mrb[0].mxu0
    %v1525 = vadd.f32 %v1381, %v1524
    %v1526 = vpop.f32.mrb[0].mxu0
    %1527 = vmatprep.mubr.f32.mxu0 %v1294
    %1528 = vmatmul.mubr.f32.gmra.mrb[0].mxu0 %v1293
    %v1529 = vpop.f32.mrb[0].mxu0
    %v1530 = vadd.f32 %v1386, %v1529
    %v1531 = vpop.f32.mrb[0].mxu0
    %1532 = vmatprep.mubr.f32.mxu0 %v1298
    %1533 = vmatmul.mubr.f32.gmra.mrb[0].mxu0 %v1297
    %v1534 = vpop.f32.mrb[0].mxu0
    %v1535 = vadd.f32 %v1391, %v1534
    %v1536 = vpop.f32.mrb[0].mxu0
    %1537 = vmatprep.mubr.f32.mxu0 %v1302
    %1538 = vmatmul.mubr.f32.gmra.mrb[0].mxu0 %v1301
    %v1539 = vpop.f32.mrb[0].mxu0
    %v1540 = vadd.f32 %v1396, %v1539
    %v1541 = vpop.f32.mrb[0].mxu0
    %1542 = vmatprep.mubr.f32.mxu0 %v1306
    %1543 = vmatmul.mubr.f32.gmra.mrb[0].mxu0 %v1305
    %v1544 = vpop.f32.mrb[0].mxu0
    %v1545 = vadd.f32 %v1401, %v1544
    %v1546 = vpop.f32.mrb[0].mxu0
    %1547 = vmatprep.mubr.f32.mxu0 %v1310
    %1548 = vmatmul.mubr.f32.gmra.mrb[0].mxu0 %v1309
    %v1549 = vpop.f32.mrb[0].mxu0
    %v1550 = vadd.f32 %v1406, %v1549
    %v1551 = vpop.f32.mrb[0].mxu0
    %1552 = vmatprep.mubr.f32.mxu0 %v1314
    %1553 = vmatmul.mubr.f32.gmra.mrb[0].mxu0 %v1313
    %v1554 = vpop.f32.mrb[0].mxu0
    %v1555 = vadd.f32 %v1411, %v1554
    %v1556 = vpop.f32.mrb[0].mxu0
    %1557 = vdwg.mxu0
    %1558 = vmatprep.subr.mxu0 0.0
    %1559 = vmatpush1.msra.mxu0 %v1221
    %1560 = vmatprep.subr.mxu0 0.0
    %1561 = vmatpush1.msra.mxu0 %v1222
    %1562 = vmatprep.subr.mxu0 0.0
    %1563 = vmatpush1.msra.mxu0 %v1223
    %1564 = vmatprep.subr.mxu0 0.0
    %1565 = vmatpush1.msra.mxu0 %v1224
    %1566 = vmatprep.subr.mxu0 0.0
    %1567 = vmatpush1.msra.mxu0 %v1225
    %1568 = vmatprep.subr.mxu0 0.0
    %1569 = vmatpush1.msra.mxu0 %v1226
    %1570 = vmatprep.subr.mxu0 0.0
    %1571 = vmatpush1.msra.mxu0 %v1227
    %1572 = vmatprep.subr.mxu0 0.0
    %1573 = vmatpush1.msra.mxu0 %v1228
    %1574 = vmatprep.subr.mxu0 0.0
    %1575 = vmatpush1.msra.mxu0 %v1229
    %1576 = vmatprep.subr.mxu0 0.0
    %1577 = vmatpush1.msra.mxu0 %v1230
    %1578 = vmatprep.subr.mxu0 0.0
    %1579 = vmatpush1.msra.mxu0 %v1231
    %1580 = vmatprep.subr.mxu0 0.0
    %1581 = vmatpush1.msra.mxu0 %v1232
    %1582 = vmatprep.subr.mxu0 0.0
    %1583 = vmatpush1.msra.mxu0 %v1233
    %1584 = vmatprep.subr.mxu0 0.0
    %1585 = vmatpush1.msra.mxu0 %v1234
    %1586 = vmatprep.subr.mxu0 0.0
    %1587 = vmatpush1.msra.mxu0 %v1235
    %1588 = vmatprep.subr.mxu0 0.0
    %1589 = vmatpush1.msra.mxu0 %v1236
    %1590 = vmatprep.subr.mxu0 0.0
    %1591 = vmatpush1.msra.mxu0 %v1237
    %1592 = vmatprep.subr.mxu0 0.0
    %1593 = vmatpush1.msra.mxu0 %v1238
    %1594 = vmatprep.subr.mxu0 0.0
    %1595 = vmatpush1.msra.mxu0 %v1239
    %1596 = vmatprep.subr.mxu0 0.0
    %1597 = vmatpush1.msra.mxu0 %v1240
    %1598 = vmatprep.subr.mxu0 0.0
    %1599 = vmatpush1.msra.mxu0 %v1241
    %1600 = vmatprep.subr.mxu0 0.0
    %1601 = vmatpush1.msra.mxu0 %v1242
    %1602 = vmatprep.subr.mxu0 0.0
    %1603 = vmatpush1.msra.mxu0 %v1243
    %1604 = vmatprep.subr.mxu0 0.0
    %1605 = vmatpush1.msra.mxu0 %v1244
    %1606 = vmatprep.subr.mxu0 0.0
    %1607 = vmatpush1.msra.mxu0 %v1245
    %1608 = vmatprep.subr.mxu0 0.0
    %1609 = vmatpush1.msra.mxu0 %v1246
    %1610 = vmatprep.subr.mxu0 0.0
    %1611 = vmatpush1.msra.mxu0 %v1247
    %1612 = vmatprep.subr.mxu0 0.0
    %1613 = vmatpush1.msra.mxu0 %v1248
    %1614 = vmatprep.subr.mxu0 0.0
    %1615 = vmatpush1.msra.mxu0 %v1249
    %1616 = vmatprep.subr.mxu0 0.0
    %1617 = vmatpush1.msra.mxu0 %v1250
    %1618 = vmatprep.subr.mxu0 0.0
    %1619 = vmatpush1.msra.mxu0 %v1251
    %1620 = vmatprep.subr.mxu0 0.0
    %1621 = vmatpush1.msra.mxu0 %v1252
    %1622 = vmatprep.mubr.f32.mxu0 %v1256
    %1623 = vmatmul.mubr.f32.gmra.mrb[0].mxu0 %v1255
    %v1624 = vpop.f32.mrb[0].mxu0
    %v1625 = vadd.f32 %v1480, %v1624
    %v1626 = vpop.f32.mrb[0].mxu0
    %1627 = vmatprep.mubr.f32.mxu0 %v1260
    %1628 = vmatmul.mubr.f32.gmra.mrb[0].mxu0 %v1259
    %v1629 = vpop.f32.mrb[0].mxu0
    %v1630 = vadd.f32 %v1485, %v1629
    %v1631 = vpop.f32.mrb[0].mxu0
    %1632 = vmatprep.mubr.f32.mxu0 %v1264
    %1633 = vmatmul.mubr.f32.gmra.mrb[0].mxu0 %v1263
    %v1634 = vpop.f32.mrb[0].mxu0
    %v1635 = vadd.f32 %v1490, %v1634
    %v1636 = vpop.f32.mrb[0].mxu0
    %1637 = vmatprep.mubr.f32.mxu0 %v1268
    %1638 = vmatmul.mubr.f32.gmra.mrb[0].mxu0 %v1267
    %v1639 = vpop.f32.mrb[0].mxu0
    %v1640 = vadd.f32 %v1495, %v1639
    %v1641 = vpop.f32.mrb[0].mxu0
    %1642 = vmatprep.mubr.f32.mxu0 %v1272
    %1643 = vmatmul.mubr.f32.gmra.mrb[0].mxu0 %v1271
    %v1644 = vpop.f32.mrb[0].mxu0
    %v1645 = vadd.f32 %v1500, %v1644
    %v1646 = vpop.f32.mrb[0].mxu0
    %1647 = vmatprep.mubr.f32.mxu0 %v1276
    %1648 = vmatmul.mubr.f32.gmra.mrb[0].mxu0 %v1275
    %v1649 = vpop.f32.mrb[0].mxu0
    %v1650 = vadd.f32 %v1505, %v1649
    %v1651 = vpop.f32.mrb[0].mxu0
    %1652 = vmatprep.mubr.f32.mxu0 %v1280
    %1653 = vmatmul.mubr.f32.gmra.mrb[0].mxu0 %v1279
    %v1654 = vpop.f32.mrb[0].mxu0
    %v1655 = vadd.f32 %v1510, %v1654
    %v1656 = vpop.f32.mrb[0].mxu0
    %1657 = vmatprep.mubr.f32.mxu0 %v1284
    %1658 = vmatmul.mubr.f32.gmra.mrb[0].mxu0 %v1283
    %v1659 = vpop.f32.mrb[0].mxu0
    %v1660 = vadd.f32 %v1515, %v1659
    %v1661 = vpop.f32.mrb[0].mxu0
    %1662 = vmatprep.mubr.f32.mxu0 %v1288
    %1663 = vmatmul.mubr.f32.gmra.mrb[0].mxu0 %v1287
    %v1664 = vpop.f32.mrb[0].mxu0
    %v1665 = vadd.f32 %v1520, %v1664
    %v1666 = vpop.f32.mrb[0].mxu0
    %1667 = vmatprep.mubr.f32.mxu0 %v1292
    %1668 = vmatmul.mubr.f32.gmra.mrb[0].mxu0 %v1291
    %v1669 = vpop.f32.mrb[0].mxu0
    %v1670 = vadd.f32 %v1525, %v1669
    %v1671 = vpop.f32.mrb[0].mxu0
    %1672 = vmatprep.mubr.f32.mxu0 %v1296
    %1673 = vmatmul.mubr.f32.gmra.mrb[0].mxu0 %v1295
    %v1674 = vpop.f32.mrb[0].mxu0
    %v1675 = vadd.f32 %v1530, %v1674
    %v1676 = vpop.f32.mrb[0].mxu0
    %1677 = vmatprep.mubr.f32.mxu0 %v1300
    %1678 = vmatmul.mubr.f32.gmra.mrb[0].mxu0 %v1299
    %v1679 = vpop.f32.mrb[0].mxu0
    %v1680 = vadd.f32 %v1535, %v1679
    %v1681 = vpop.f32.mrb[0].mxu0
    %1682 = vmatprep.mubr.f32.mxu0 %v1304
    %1683 = vmatmul.mubr.f32.gmra.mrb[0].mxu0 %v1303
    %v1684 = vpop.f32.mrb[0].mxu0
    %v1685 = vadd.f32 %v1540, %v1684
    %v1686 = vpop.f32.mrb[0].mxu0
    %1687 = vmatprep.mubr.f32.mxu0 %v1308
    %1688 = vmatmul.mubr.f32.gmra.mrb[0].mxu0 %v1307
    %v1689 = vpop.f32.mrb[0].mxu0
    %v1690 = vadd.f32 %v1545, %v1689
    %v1691 = vpop.f32.mrb[0].mxu0
    %1692 = vmatprep.mubr.f32.mxu0 %v1312
    %1693 = vmatmul.mubr.f32.gmra.mrb[0].mxu0 %v1311
    %v1694 = vpop.f32.mrb[0].mxu0
    %v1695 = vadd.f32 %v1550, %v1694
    %v1696 = vpop.f32.mrb[0].mxu0
    %1697 = vmatprep.mubr.f32.mxu0 %v1316
    %1698 = vmatmul.mubr.f32.gmra.mrb[0].mxu0 %v1315
    %v1699 = vpop.f32.mrb[0].mxu0
    %v1700 = vadd.f32 %v1555, %v1699
    %v1701 = vpop.f32.mrb[0].mxu0
    %1702 = vdwg.mxu0
    %v1703 = vmax.f32 %v1625, 0.0
    %v1704 = vmax.f32 %v1630, 0.0
    %v1705 = vmax.f32 %v1635, 0.0
    %v1706 = vmax.f32 %v1640, 0.0
    %v1707 = vmax.f32 %v1645, 0.0
    %v1708 = vmax.f32 %v1650, 0.0
    %v1709 = vmax.f32 %v1655, 0.0
    %v1710 = vmax.f32 %v1660, 0.0
    %v1711 = vmax.f32 %v1665, 0.0
    %v1712 = vmax.f32 %v1670, 0.0
    %v1713 = vmax.f32 %v1675, 0.0
    %v1714 = vmax.f32 %v1680, 0.0
    %v1715 = vmax.f32 %v1685, 0.0
    %v1716 = vmax.f32 %v1690, 0.0
    %v1717 = vmax.f32 %v1695, 0.0
    %v1718 = vmax.f32 %v1700, 0.0
    %v1719 = vld [vmem:[%s5] sm:$0xff]
    %v1720 = vld [vmem:[%s5 + $0x8] sm:$0xff]
    %v1721 = vld [vmem:[%s5 + $0x10] sm:$0xff]
    %v1722 = vld [vmem:[%s5 + $0x18] sm:$0xff]
    %v1723 = vld [vmem:[%s6] sm:$0xff]
    %v1724 = vld [vmem:[%s6 + $0x8] sm:$0xff]
    %v1725 = vld [vmem:[%s6 + $0x10] sm:$0xff]
    %v1726 = vld [vmem:[%s6 + $0x18] sm:$0xff]
    %1728 = vset.pattern.permute.xlu0 0
    %1729 = vperm.xlu0 %1728, %v1723
    %v1730 = vpop.permute.xlu0 %1729
    %1733 = vset.pattern.permute.xlu0 0
    %1734 = vperm.xlu0 %1733, %v1724
    %v1735 = vpop.permute.xlu0 %1734
    %1738 = vset.pattern.permute.xlu0 0
    %1739 = vperm.xlu0 %1738, %v1725
    %v1740 = vpop.permute.xlu0 %1739
    %1743 = vset.pattern.permute.xlu0 0
    %1744 = vperm.xlu0 %1743, %v1726
    %v1745 = vpop.permute.xlu0 %1744
    %1747 = vmatprep.subr.mxu0 0.0
    %1748 = vmatpush1.msra.mxu0 %v1703
    %1749 = vmatprep.subr.mxu0 0.0
    %1750 = vmatpush1.msra.mxu0 %v1704
    %1751 = vmatprep.subr.mxu0 0.0
    %1752 = vmatpush1.msra.mxu0 %v1705
    %1753 = vmatprep.subr.mxu0 0.0
    %1754 = vmatpush1.msra.mxu0 %v1706
    %1755 = vmatprep.subr.mxu0 0.0
    %1756 = vmatpush1.msra.mxu0 %v1707
    %1757 = vmatprep.subr.mxu0 0.0
    %1758 = vmatpush1.msra.mxu0 %v1708
    %1759 = vmatprep.subr.mxu0 0.0
    %1760 = vmatpush1.msra.mxu0 %v1709
    %1761 = vmatprep.subr.mxu0 0.0
    %1762 = vmatpush1.msra.mxu0 %v1710
    %1763 = vmatprep.subr.mxu0 0.0
    %1764 = vmatpush1.msra.mxu0 %v1711
    %1765 = vmatprep.subr.mxu0 0.0
    %1766 = vmatpush1.msra.mxu0 %v1712
    %1767 = vmatprep.subr.mxu0 0.0
    %1768 = vmatpush1.msra.mxu0 %v1713
    %1769 = vmatprep.subr.mxu0 0.0
    %1770 = vmatpush1.msra.mxu0 %v1714
    %1771 = vmatprep.subr.mxu0 0.0
    %1772 = vmatpush1.msra.mxu0 %v1715
    %1773 = vmatprep.subr.mxu0 0.0
    %1774 = vmatpush1.msra.mxu0 %v1716
    %1775 = vmatprep.subr.mxu0 0.0
    %1776 = vmatpush1.msra.mxu0 %v1717
    %1777 = vmatprep.subr.mxu0 0.0
    %1778 = vmatpush1.msra.mxu0 %v1718
    %1779 = vmatprep.subr.mxu0 0.0
    %1780 = vmatpush1.msra.mxu0 0.0
    %1781 = vmatprep.subr.mxu0 0.0
    %1782 = vmatpush1.msra.mxu0 0.0
    %1783 = vmatprep.subr.mxu0 0.0
    %1784 = vmatpush1.msra.mxu0 0.0
    %1785 = vmatprep.subr.mxu0 0.0
    %1786 = vmatpush1.msra.mxu0 0.0
    %1787 = vmatprep.subr.mxu0 0.0
    %1788 = vmatpush1.msra.mxu0 0.0
    %1789 = vmatprep.subr.mxu0 0.0
    %1790 = vmatpush1.msra.mxu0 0.0
    %1791 = vmatprep.subr.mxu0 0.0
    %1792 = vmatpush1.msra.mxu0 0.0
    %1793 = vmatprep.subr.mxu0 0.0
    %1794 = vmatpush1.msra.mxu0 0.0
    %1795 = vmatprep.subr.mxu0 0.0
    %1796 = vmatpush1.msra.mxu0 0.0
    %1797 = vmatprep.subr.mxu0 0.0
    %1798 = vmatpush1.msra.mxu0 0.0
    %1799 = vmatprep.subr.mxu0 0.0
    %1800 = vmatpush1.msra.mxu0 0.0
    %1801 = vmatprep.subr.mxu0 0.0
    %1802 = vmatpush1.msra.mxu0 0.0
    %1803 = vmatprep.subr.mxu0 0.0
    %1804 = vmatpush1.msra.mxu0 0.0
    %1805 = vmatprep.subr.mxu0 0.0
    %1806 = vmatpush1.msra.mxu0 0.0
    %1807 = vmatprep.subr.mxu0 0.0
    %1808 = vmatpush1.msra.mxu0 0.0
    %1809 = vmatprep.subr.mxu0 0.0
    %1810 = vmatpush1.msra.mxu0 0.0
    %1811 = vmatprep.mubr.f32.mxu0 0.0
    %1812 = vmatmul.mubr.f32.gmra.mrb[0].mxu0 %v1719
    %v1813 = vpop.f32.mrb[0].mxu0
    %v1814 = vadd.f32 %v1730, %v1813
    %v1815 = vpop.f32.mrb[0].mxu0
    %1816 = vmatprep.mubr.f32.mxu0 0.0
    %1817 = vmatmul.mubr.f32.gmra.mrb[0].mxu0 %v1720
    %v1818 = vpop.f32.mrb[0].mxu0
    %v1819 = vadd.f32 %v1735, %v1818
    %v1820 = vpop.f32.mrb[0].mxu0
    %1821 = vmatprep.mubr.f32.mxu0 0.0
    %1822 = vmatmul.mubr.f32.gmra.mrb[0].mxu0 %v1721
    %v1823 = vpop.f32.mrb[0].mxu0
    %v1824 = vadd.f32 %v1740, %v1823
    %v1825 = vpop.f32.mrb[0].mxu0
    %1826 = vmatprep.mubr.f32.mxu0 0.0
    %1827 = vmatmul.mubr.f32.gmra.mrb[0].mxu0 %v1722
    %v1828 = vpop.f32.mrb[0].mxu0
    %v1829 = vadd.f32 %v1745, %v1828
    %v1830 = vpop.f32.mrb[0].mxu0
    %1831 = vdwg.mxu0
    %v1832 = vmul.f32 %v1814, 0.01
    %v1833 = vmul.f32 %v1819, 0.01
    %v1834 = vmul.f32 %v1824, 0.01
    %v1835 = vmul.f32 %v1829, 0.01
    %v1836 = vmax.f32 %v1814, %v1832
    %v1837 = vmax.f32 %v1819, %v1833
    %v1838 = vmax.f32 %v1824, %v1834
    %v1839 = vmax.f32 %v1829, %v1835
    %v1840 = vld [vmem:[%s7] sm:$0xff]
    %v1841 = vld [vmem:[%s7 + $0x8] sm:$0xff]
    %v1842 = vld [vmem:[%s7 + $0x10] sm:$0xff]
    %v1843 = vld [vmem:[%s7 + $0x18] sm:$0xff]
    %1845 = vset.pattern.permute.xlu0 0
    %1846 = vperm.xlu0 %1845, %v1840
    %v1847 = vpop.permute.xlu0 %1846
    %1850 = vset.pattern.permute.xlu0 0
    %1851 = vperm.xlu0 %1850, %v1841
    %v1852 = vpop.permute.xlu0 %1851
    %1855 = vset.pattern.permute.xlu0 0
    %1856 = vperm.xlu0 %1855, %v1842
    %v1857 = vpop.permute.xlu0 %1856
    %1860 = vset.pattern.permute.xlu0 0
    %1861 = vperm.xlu0 %1860, %v1843
    %v1862 = vpop.permute.xlu0 %1861
    %v1864 = vmul.f32 %v1836, %v1847
    %v1865 = vmul.f32 %v1837, %v1852
    %v1866 = vmul.f32 %v1838, %v1857
    %v1867 = vmul.f32 %v1839, %v1862
    %v1868 = vadd.f32 %v1864, %v1865
    %v1869 = vadd.f32 %v1868, %v1866
    %v1870 = vadd.f32 %v1869, %v1867
    %v1871 = vrot.slane %v1870, 4
    %v1872 = vadd.f32 %v1870, %v1871
    %v1873 = vrot.slane %v1872, 2
    %v1874 = vadd.f32 %v1872, %v1873
    %v1875 = vrot.slane %v1874, 1
    %v1876 = vadd.f32 %v1874, %v1875
    %v1877 = vld [vmem:[#allocation2] sm:$0x1]
    %1879 = vset.pattern.permute.xlu0 0
    %1880 = vperm.xlu0 %1879, %v1877
    %v1881 = vpop.permute.xlu0 %1880
    %v1883 = vlaneseq
    %v1884 = vshrl.u32 %v1883, 7
    %v1885 = vsub.s32 0, %v1884
    %v1886 = vrot.slane %v1881, %v1885
    %v1887 = vadd.f32 %v1876, %v1886
    %v1888 = vxor.u32 %v1887, 2147483648
    %v1889 = vmul.f32 %v1888, 1.442695
    %v1890 = vpow.pop %v1889
    %v1891 = vadd.f32 %v1890, 1.0
    %v1892 = vrcp.pop %v1891
    %v1893 = vmul.f32 1.0, %v1892
    %1894 = vst [vmem:[#allocation3] sm:$0x1] %v1893
    // Predicated region
    $region38: #{tpu_custom_call.1} parent=1 // pred_check
      _
    $region39: #{tpu_custom_call.1} parent=1 // pred_check_branch
      %1896 = sbr.rel (0) target = $region41
    $region40: #{tpu_custom_call.1} parent=1 // pred_region
      %s1898 = ssub.s32 16, 16
      %1899 = vsyncadd [#allocation4], %s1898
      %s1901 = sshll.u32 [#allocation3], 4
      %s1902 = int_to_ptr.vmem [resolvable:$true] %s1901
      %1904 = dma.vmem_to_hbm [thread:$0]  %s1902, 16, %s9, [#allocation4]
    $region41: #{tpu_custom_call.1} parent=1 // pred_fallthru
      _
    // Predicated region
    $region42: #{tpu_custom_call.1} parent=1 // pred_check
      _
    $region43: #{tpu_custom_call.1} parent=1 // pred_check_branch
      %1906 = sbr.rel (0) target = $region45
    $region44: #{tpu_custom_call.1} parent=1 // pred_region
      %1907 = dma.done [#allocation4], 16
    $region45: #{tpu_custom_call.1} parent=1 // pred_fallthru
      _
    %1908 = vsyncpa [#allocation4], 1

</llo_original>
